<compile_context>
chip_gen: v6e
topology: v6e:2x2x1
jax: 0.10.0
libtpu: 0.0.40
codegen_flags: <defaults>
</compile_context>

<pallas_src>
import jax
import jax.numpy as jnp
from jax.experimental import pallas as pl
from jax.experimental.pallas import tpu as pltpu


def _round_up(a, b):
    return (a + b - 1) // b * b


def _make_ithp_kernel(M_total, B0_dim, B1_dim, inter_dim, tm, mm_dtype):
    """Fused ITHP forward kernel in (feature, tokens) lane-dense layout."""
    kl0_scale = -0.5 / float(B0_dim)
    kl1_scale = -0.5 / float(B1_dim)

    def kernel(
        x_ref, eps1_ref, eps2_ref, ac_ref, vis_ref,
        w_e1a, b_e1a, w_e1b, b_e1b,        # encoder1
        w_f1, b_f1,                        # fused [MLP1 layer1 ; encoder2 layer1]
        w_m1b, b_m1b,                      # MLP1 layer2
        w_e2b, b_e2b,                      # encoder2 layer2
        w_m2a, b_m2a, w_m2b, b_m2b,        # MLP2
        b1_out, stats_out,
    ):
        i = pl.program_id(0)

        # Valid-token mask: tokens were padded up to a multiple of tm.
        col = jax.lax.broadcasted_iota(jnp.int32, (1, tm), 1)
        maskf = ((i * tm + col) < M_total).astype(jnp.float32)

        x = x_ref[...]                                    # (X0, tm), mm_dtype

        # ---- encoder1: Linear -> ReLU -> Linear, split(mu, logvar) ----
        h = jnp.maximum(
            jnp.dot(w_e1a[...], x, preferred_element_type=jnp.float32)
            + b_e1a[...], 0.0)
        h1 = (jnp.dot(w_e1b[...], h.astype(mm_dtype),
                      preferred_element_type=jnp.float32) + b_e1b[...])
        mu1, logvar1 = h1[:B0_dim, :], h1[B0_dim:, :]
        s1 = jnp.exp(0.5 * logvar1)            # reused: exp(logvar1) == s1*s1
        kl0_p = kl0_scale * jnp.sum(
            (1.0 + logvar1 - mu1 * mu1 - s1 * s1) * maskf)

        # ---- reparameterise b0 ----
        b0 = mu1 + eps1_ref[...] * s1                     # (B0, tm) f32

        # ---- fused first layers of MLP1 and encoder2 (shared LHS b0) ----
        z = jnp.maximum(
            jnp.dot(w_f1[...], b0.astype(mm_dtype),
                    preferred_element_type=jnp.float32) + b_f1[...], 0.0)
        m1, h2a = z[:inter_dim, :], z[inter_dim:, :]

        # ---- MLP1 layer 2 + sigmoid; masked MSE vs acoustic ----
        out1 = jax.nn.sigmoid(
            jnp.dot(w_m1b[...], m1.astype(mm_dtype),
                    preferred_element_type=jnp.float32) + b_m1b[...])
        d0 = out1 - ac_ref[...]
        mse0_p = jnp.sum(d0 * d0 * maskf)

        # ---- encoder2 layer 2, split(mu, logvar) ----
        h2 = (jnp.dot(w_e2b[...], h2a.astype(mm_dtype),
                      preferred_element_type=jnp.float32) + b_e2b[...])
        mu2, logvar2 = h2[:B1_dim, :], h2[B1_dim:, :]
        s2 = jnp.exp(0.5 * logvar2)
        kl1_p = kl1_scale * jnp.sum(
            (1.0 + logvar2 - mu2 * mu2 - s2 * s2) * maskf)

        # ---- reparameterise b1 (the returned representation) ----
        b1 = mu2 + eps2_ref[...] * s2
        b1_out[...] = b1                                  # lane-dense store

        # ---- MLP2 + sigmoid; masked MSE vs visual ----
        m2 = jnp.maximum(
            jnp.dot(w_m2a[...], b1.astype(mm_dtype),
                    preferred_element_type=jnp.float32) + b_m2a[...], 0.0)
        out2 = jax.nn.sigmoid(
            jnp.dot(w_m2b[...], m2.astype(mm_dtype),
                    preferred_element_type=jnp.float32) + b_m2b[...])
        d1 = out2 - vis_ref[...]
        mse1_p = jnp.sum(d1 * d1 * maskf)

        # Pack the four per-block partial sums into one lane-dense (1,8,128)
        # tile (row k holds stat k broadcast across lanes).  Per-block partials
        # keep the grid axis truly parallel; the final reduction happens in JAX.
        ridx = jax.lax.broadcasted_iota(jnp.int32, (1, 8, 128), 1)
        stats_out[...] = (
            jnp.where(ridx == 0, kl0_p, 0.0)
            + jnp.where(ridx == 1, mse0_p, 0.0)
            + jnp.where(ridx == 2, kl1_p, 0.0)
            + jnp.where(ridx == 3, mse1_p, 0.0))

    return kernel


def ithp_forward_pallas(x, visual, acoustic, eps1, eps2, params, cfg, *,
                        tm=512, matmul_dtype=jnp.bfloat16):
    """Fused ITHP forward.  Returns (b1, IB_total, kl0, mse0, kl1, mse1)."""
    B, S, X0 = x.shape
    X1 = acoustic.shape[-1]
    X2 = visual.shape[-1]
    B0 = cfg["B0_dim"]
    B1 = cfg["B1_dim"]
    inter = cfg["inter_dim"]
    M = B * S

    # Lane-dense row tile: a multiple of 128, no larger than the padded token
    # count.  Big tiles amortize the ~0.35us/step pipeline overhead; even
    # tm=4096 keeps the per-step working set a few MiB, far below the 32 MiB
    # scoped-VMEM default on v5e/v6e/v7x, so no vmem_limit override is needed.
    tm = max(128, min(_round_up(tm, 128), _round_up(M, 128)))
    Mp = _round_up(M, tm)
    num_blocks = Mp // tm
    pad = Mp - M

    def to_feature_major(a, d, dtype=jnp.float32):
        a = a.reshape(M, d).astype(jnp.float32)
        if pad:
            a = jnp.pad(a, ((0, pad), (0, 0)))
        return a.T.astype(dtype)          # (d, Mp) — tokens on the lane axis

    xT = to_feature_major(x, X0, matmul_dtype)
    e1T = to_feature_major(eps1, B0)
    e2T = to_feature_major(eps2, B1)
    acT = to_feature_major(acoustic, X1)
    visT = to_feature_major(visual, X2)

    (we1a, be1a), (we1b, be1b), (wm1a, bm1a), (wm1b, bm1b), \
        (we2a, be2a), (we2b, be2b), (wm2a, bm2a), (wm2b, bm2b) = params

    def wt(w):   # (in, out) -> (out, in), matmul dtype (bf16 on MXU, f32 acc)
        return jnp.asarray(w, jnp.float32).T.astype(matmul_dtype)

    def bt(b):   # (1, out) -> (out, 1); bias add stays in f32
        return jnp.asarray(b, jnp.float32).T

    # Fuse the two matmuls that share b0 as LHS (MLP1 layer1 + encoder2 layer1).
    w_f1 = jnp.concatenate([wt(wm1a), wt(we2a)], axis=0)
    b_f1 = jnp.concatenate([bt(bm1a), bt(be2a)], axis=0)

    weight_args = [
        wt(we1a), bt(be1a), wt(we1b), bt(be1b),
        w_f1, b_f1,
        wt(wm1b), bt(bm1b), wt(we2b), bt(be2b),
        wt(wm2a), bt(bm2a), wt(wm2b), bt(bm2b),
    ]
    # Constant index_map -> Pallas skips the re-DMA when the block index does
    # not change between grid steps, so weights stay resident in VMEM.
    weight_specs = [pl.BlockSpec(w.shape, lambda i: (0, 0)) for w in weight_args]

    def tok_spec(d):
        return pl.BlockSpec((d, tm), lambda i: (0, i))

    kernel = _make_ithp_kernel(M, B0, B1, inter, tm, matmul_dtype)

    grid_spec = pltpu.PrefetchScalarGridSpec(
        num_scalar_prefetch=0,
        grid=(num_blocks,),
        in_specs=[tok_spec(X0), tok_spec(B0), tok_spec(B1),
                  tok_spec(X1), tok_spec(X2)] + weight_specs,
        out_specs=[
            pl.BlockSpec((B1, tm), lambda i: (0, i)),        # b1 (lane-dense)
            pl.BlockSpec((1, 8, 128), lambda i: (i, 0, 0)),  # packed partials
        ],
    )

    b1T, stats = pl.pallas_call(
        kernel,
        out_shape=(
            jax.ShapeDtypeStruct((B1, Mp), jnp.float32),
            jax.ShapeDtypeStruct((num_blocks, 8, 128), jnp.float32),
        ),
        grid_spec=grid_spec,
        # No resident accumulators -> the grid axis is truly parallel
        # (v7x megacore can shard blocks across both TensorCores).
        compiler_params=pltpu.CompilerParams(
            dimension_semantics=("parallel",)),
    )(xT, e1T, e2T, acT, visT, *weight_args)

    sums = jnp.sum(stats[:, :, 0], axis=0)          # (8,) packed partial sums
    kl0 = sums[0] / M
    mse0 = sums[1] / (M * X1)
    kl1 = sums[2] / M
    mse1 = sums[3] / (M * X2)

    IB_total = (kl0 + cfg["p_beta"] * mse0) \
        + cfg["p_lambda"] * (kl1 + cfg["p_gamma"] * mse1)

    b1 = b1T.T[:M].reshape(B, S, B1)
    return b1, IB_total, kl0, mse0, kl1, mse1


# ----------------------- pure-JAX reference (for checking) -----------------------
def ithp_forward_ref(x, visual, acoustic, eps1, eps2, params, cfg):
    B0 = cfg["B0_dim"]
    (we1a, be1a), (we1b, be1b), (wm1a, bm1a), (wm1b, bm1b), \
        (we2a, be2a), (we2b, be2b), (wm2a, bm2a), (wm2b, bm2b) = params

    def kl(mu, logvar):
        return jnp.mean(-0.5 * jnp.mean(1 + logvar - mu**2 - jnp.exp(logvar), axis=-1))

    h1 = jnp.maximum(x @ we1a + be1a, 0.0) @ we1b + be1b
    mu1, logvar1 = h1[..., :B0], h1[..., B0:]
    kl0 = kl(mu1, logvar1)
    b0 = mu1 + eps1 * jnp.exp(logvar1 / 2)
    out1 = jax.nn.sigmoid(jnp.maximum(b0 @ wm1a + bm1a, 0.0) @ wm1b + bm1b)
    mse0 = jnp.mean((out1 - acoustic) ** 2)

    B1 = cfg["B1_dim"]
    h2 = jnp.maximum(b0 @ we2a + be2a, 0.0) @ we2b + be2b
    mu2, logvar2 = h2[..., :B1], h2[..., B1:]
    kl1 = kl(mu2, logvar2)
    b1 = mu2 + eps2 * jnp.exp(logvar2 / 2)
    out2 = jax.nn.sigmoid(jnp.maximum(b1 @ wm2a + bm2a, 0.0) @ wm2b + bm2b)
    mse1 = jnp.mean((out2 - visual) ** 2)

    IB_total = (kl0 + cfg["p_beta"] * mse0) + cfg["p_lambda"] * (kl1 + cfg["p_gamma"] * mse1)
    return b1, IB_total, kl0, mse0, kl1, mse1


def init_linear(key, fan_in, fan_out):
    """PyTorch-style uniform init, stored as (in, out) so the reference does x @ W."""
    kw, kb = jax.random.split(key)
    bound = 1.0 / jnp.sqrt(fan_in)
    w = jax.random.uniform(kw, (fan_in, fan_out), jnp.float32, -bound, bound)
    b = jax.random.uniform(kb, (1, fan_out), jnp.float32, -bound, bound)
    return w, b


if __name__ == "__main__":
    cfg = dict(
        X0_dim=32,      # text dim
        X1_dim=16,      # acoustic dim
        X2_dim=16,      # visual dim
        inter_dim=32,
        drop_prob=0.1,  # dropout is identity in eval-mode forward
        max_sen_len=8,
        B0_dim=16,
        B1_dim=16,
        p_beta=1.0,
        p_gamma=0.5,
        p_lambda=0.1,
    )
    batch = 2
    key = jax.random.PRNGKey(0)
    (k_x, k_v, k_a, k_e1, k_e2, k_p) = jax.random.split(key, 6)

    x = jax.random.normal(k_x, (batch, cfg["max_sen_len"], cfg["X0_dim"]), jnp.float32)
    visual = jax.random.normal(k_v, (batch, cfg["max_sen_len"], cfg["X2_dim"]), jnp.float32)
    acoustic = jax.random.normal(k_a, (batch, cfg["max_sen_len"], cfg["X1_dim"]), jnp.float32)
    eps1 = jax.random.normal(k_e1, (batch, cfg["max_sen_len"], cfg["B0_dim"]), jnp.float32)
    eps2 = jax.random.normal(k_e2, (batch, cfg["max_sen_len"], cfg["B1_dim"]), jnp.float32)

    pk = jax.random.split(k_p, 8)
    params = [
        init_linear(pk[0], cfg["X0_dim"], cfg["inter_dim"]),        # encoder1 L1
        init_linear(pk[1], cfg["inter_dim"], cfg["B0_dim"] * 2),    # encoder1 L2
        init_linear(pk[2], cfg["B0_dim"], cfg["inter_dim"]),        # MLP1 L1
        init_linear(pk[3], cfg["inter_dim"], cfg["X1_dim"]),        # MLP1 L2
        init_linear(pk[4], cfg["B0_dim"], cfg["inter_dim"]),        # encoder2 L1
        init_linear(pk[5], cfg["inter_dim"], cfg["B1_dim"] * 2),    # encoder2 L2
        init_linear(pk[6], cfg["B1_dim"], cfg["inter_dim"]),        # MLP2 L1
        init_linear(pk[7], cfg["inter_dim"], cfg["X2_dim"]),        # MLP2 L2
    ]

    refs = ithp_forward_ref(x, visual, acoustic, eps1, eps2, params, cfg)
    b1_r, IB_r, kl0_r, mse0_r, kl1_r, mse1_r = refs

    # Performance default: bf16 matmul operands, f32 accumulation/elementwise.
    outs_bf16 = ithp_forward_pallas(x, visual, acoustic, eps1, eps2, params, cfg,
                                    tm=512, matmul_dtype=jnp.bfloat16)
    outs_bf16 = jax.block_until_ready(outs_bf16)
    b1_k, IB_k, kl0_k, mse0_k, kl1_k, mse1_k = outs_bf16
    assert jnp.allclose(b1_k, b1_r, atol=5e-2, rtol=5e-2)
    for a, b in [(IB_k, IB_r), (kl0_k, kl0_r), (mse0_k, mse0_r),
                 (kl1_k, kl1_r), (mse1_k, mse1_r)]:
        assert jnp.allclose(a, b, atol=5e-2, rtol=5e-2)

    # Tight verification with f32 matmuls.
    outs_f32 = ithp_forward_pallas(x, visual, acoustic, eps1, eps2, params, cfg,
                                   tm=512, matmul_dtype=jnp.float32)
    outs_f32 = jax.block_until_ready(outs_f32)
    b1_k, IB_k, kl0_k, mse0_k, kl1_k, mse1_k = outs_f32
    assert jnp.allclose(b1_k, b1_r, atol=1e-4, rtol=1e-4)
    for a, b in [(IB_k, IB_r), (kl0_k, kl0_r), (mse0_k, mse0_r),
                 (kl1_k, kl1_r), (mse1_k, mse1_r)]:
        assert jnp.allclose(a, b, atol=1e-4, rtol=1e-4)

    print("KERNEL_OK")
</pallas_src>

<mosaic_0001>
module attributes {stable_mosaic.version = 11 : i64} {
  func.func @kernel(%arg0: i32, %arg1: memref<32x128xbf16, #tpu.memory_space<vmem>>, %arg2: memref<16x128xf32, #tpu.memory_space<vmem>>, %arg3: memref<16x128xf32, #tpu.memory_space<vmem>>, %arg4: memref<16x128xf32, #tpu.memory_space<vmem>>, %arg5: memref<16x128xf32, #tpu.memory_space<vmem>>, %arg6: memref<32x32xbf16, #tpu.memory_space<vmem>>, %arg7: memref<32x1xf32, #tpu.memory_space<vmem>>, %arg8: memref<32x32xbf16, #tpu.memory_space<vmem>>, %arg9: memref<32x1xf32, #tpu.memory_space<vmem>>, %arg10: memref<64x16xbf16, #tpu.memory_space<vmem>>, %arg11: memref<64x1xf32, #tpu.memory_space<vmem>>, %arg12: memref<16x32xbf16, #tpu.memory_space<vmem>>, %arg13: memref<16x1xf32, #tpu.memory_space<vmem>>, %arg14: memref<32x32xbf16, #tpu.memory_space<vmem>>, %arg15: memref<32x1xf32, #tpu.memory_space<vmem>>, %arg16: memref<32x16xbf16, #tpu.memory_space<vmem>>, %arg17: memref<32x1xf32, #tpu.memory_space<vmem>>, %arg18: memref<16x32xbf16, #tpu.memory_space<vmem>>, %arg19: memref<16x1xf32, #tpu.memory_space<vmem>>, %arg20: memref<16x128xf32, #tpu.memory_space<vmem>>, %arg21: memref<1x8x128xf32, #tpu.memory_space<vmem>>) attributes {dimension_semantics = [#tpu.dimension_semantics<parallel>], iteration_bounds = array<i64: 1>, scalar_prefetch = 0 : i64, scratch_operands = 0 : i64, tpu.core_type = #tpu.core_type<tc>, window_params = [{transform_indices = @transform_0, window_bounds = array<i64: 32, 128>}, {transform_indices = @transform_1, window_bounds = array<i64: 16, 128>}, {transform_indices = @transform_2, window_bounds = array<i64: 16, 128>}, {transform_indices = @transform_3, window_bounds = array<i64: 16, 128>}, {transform_indices = @transform_4, window_bounds = array<i64: 16, 128>}, {pipeline_mode = #tpu.pipeline_mode<synchronous>, transform_indices = @transform_5, window_bounds = array<i64: 32, 32>}, {pipeline_mode = #tpu.pipeline_mode<synchronous>, transform_indices = @transform_6, window_bounds = array<i64: 32, 1>}, {pipeline_mode = #tpu.pipeline_mode<synchronous>, transform_indices = @transform_7, window_bounds = array<i64: 32, 32>}, {pipeline_mode = #tpu.pipeline_mode<synchronous>, transform_indices = @transform_8, window_bounds = array<i64: 32, 1>}, {pipeline_mode = #tpu.pipeline_mode<synchronous>, transform_indices = @transform_9, window_bounds = array<i64: 64, 16>}, {pipeline_mode = #tpu.pipeline_mode<synchronous>, transform_indices = @transform_10, window_bounds = array<i64: 64, 1>}, {pipeline_mode = #tpu.pipeline_mode<synchronous>, transform_indices = @transform_11, window_bounds = array<i64: 16, 32>}, {pipeline_mode = #tpu.pipeline_mode<synchronous>, transform_indices = @transform_12, window_bounds = array<i64: 16, 1>}, {pipeline_mode = #tpu.pipeline_mode<synchronous>, transform_indices = @transform_13, window_bounds = array<i64: 32, 32>}, {pipeline_mode = #tpu.pipeline_mode<synchronous>, transform_indices = @transform_14, window_bounds = array<i64: 32, 1>}, {pipeline_mode = #tpu.pipeline_mode<synchronous>, transform_indices = @transform_15, window_bounds = array<i64: 32, 16>}, {pipeline_mode = #tpu.pipeline_mode<synchronous>, transform_indices = @transform_16, window_bounds = array<i64: 32, 1>}, {pipeline_mode = #tpu.pipeline_mode<synchronous>, transform_indices = @transform_17, window_bounds = array<i64: 16, 32>}, {pipeline_mode = #tpu.pipeline_mode<synchronous>, transform_indices = @transform_18, window_bounds = array<i64: 16, 1>}, {transform_indices = @transform_19, window_bounds = array<i64: 16, 128>}, {transform_indices = @transform_20, window_bounds = array<i64: 1, 8, 128>}]} {
    %0 = tpu.iota {dimensions = array<i32: 1>} : vector<1x128xi32>
    %c128_i32 = arith.constant 128 : i32
    %1 = arith.muli %arg0, %c128_i32 : i32
    %2 = vector.broadcast %1 : i32 to vector<1x128xi32>
    %3 = arith.addi %2, %0 : vector<1x128xi32>
    %c16_i32 = arith.constant 16 : i32
    %4 = vector.broadcast %c16_i32 : i32 to vector<1x128xi32>
    %5 = arith.cmpi slt, %3, %4 : vector<1x128xi32>
    %6 = arith.extui %5 : vector<1x128xi1> to vector<1x128xi32>
    %7 = arith.sitofp %6 : vector<1x128xi32> to vector<1x128xf32>
    %c0 = arith.constant 0 : index
    %c0_0 = arith.constant 0 : index
    %8 = vector.load %arg1[%c0, %c0_0] : memref<32x128xbf16, #tpu.memory_space<vmem>>, vector<32x128xbf16>
    %c0_1 = arith.constant 0 : index
    %c0_2 = arith.constant 0 : index
    %9 = vector.load %arg6[%c0_1, %c0_2] : memref<32x32xbf16, #tpu.memory_space<vmem>>, vector<32x32xbf16>
    %cst = arith.constant dense<0.000000e+00> : vector<32x128xf32>
    %10 = tpu.matmul %9, %8, %cst {dimension_numbers = #tpu.dot_dimension_numbers<[1], [0], [0], [1], [0, 0, 1, 1], [], []>} : vector<32x32xbf16>, vector<32x128xbf16>, vector<32x128xf32> -> vector<32x128xf32>
    %c0_3 = arith.constant 0 : index
    %c0_4 = arith.constant 0 : index
    %11 = vector.load %arg7[%c0_3, %c0_4] : memref<32x1xf32, #tpu.memory_space<vmem>>, vector<32x1xf32>
    %12 = vector.broadcast %11 : vector<32x1xf32> to vector<32x128xf32>
    %13 = arith.addf %10, %12 : vector<32x128xf32>
    %cst_5 = arith.constant 0.000000e+00 : f32
    %14 = vector.broadcast %cst_5 : f32 to vector<32x128xf32>
    %15 = arith.maximumf %13, %14 : vector<32x128xf32>
    %c0_6 = arith.constant 0 : index
    %c0_7 = arith.constant 0 : index
    %16 = vector.load %arg8[%c0_6, %c0_7] : memref<32x32xbf16, #tpu.memory_space<vmem>>, vector<32x32xbf16>
    %17 = arith.truncf %15 : vector<32x128xf32> to vector<32x128xbf16>
    %cst_8 = arith.constant dense<0.000000e+00> : vector<32x128xf32>
    %18 = tpu.matmul %16, %17, %cst_8 {dimension_numbers = #tpu.dot_dimension_numbers<[1], [0], [0], [1], [0, 0, 1, 1], [], []>} : vector<32x32xbf16>, vector<32x128xbf16>, vector<32x128xf32> -> vector<32x128xf32>
    %c0_9 = arith.constant 0 : index
    %c0_10 = arith.constant 0 : index
    %19 = vector.load %arg9[%c0_9, %c0_10] : memref<32x1xf32, #tpu.memory_space<vmem>>, vector<32x1xf32>
    %20 = vector.broadcast %19 : vector<32x1xf32> to vector<32x128xf32>
    %21 = arith.addf %18, %20 : vector<32x128xf32>
    %22 = vector.extract_strided_slice %21 {offsets = [0, 0], sizes = [16, 128], strides = [1, 1]} : vector<32x128xf32> to vector<16x128xf32>
    %23 = vector.extract_strided_slice %21 {offsets = [16, 0], sizes = [16, 128], strides = [1, 1]} : vector<32x128xf32> to vector<16x128xf32>
    %cst_11 = arith.constant 5.000000e-01 : f32
    %24 = vector.broadcast %cst_11 : f32 to vector<16x128xf32>
    %25 = arith.mulf %24, %23 : vector<16x128xf32>
    %26 = math.exp %25 : vector<16x128xf32>
    %cst_12 = arith.constant 1.000000e+00 : f32
    %27 = vector.broadcast %cst_12 : f32 to vector<16x128xf32>
    %28 = arith.addf %27, %23 : vector<16x128xf32>
    %29 = arith.mulf %22, %22 : vector<16x128xf32>
    %30 = arith.subf %28, %29 : vector<16x128xf32>
    %31 = arith.mulf %26, %26 : vector<16x128xf32>
    %32 = arith.subf %30, %31 : vector<16x128xf32>
    %33 = vector.broadcast %7 : vector<1x128xf32> to vector<16x128xf32>
    %34 = arith.mulf %32, %33 : vector<16x128xf32>
    %35 = vector.shape_cast %34 : vector<16x128xf32> to vector<1x16x128xf32>
    %cst_13 = arith.constant dense<0.000000e+00> : vector<1xf32>
    %36 = vector.multi_reduction <add>, %35, %cst_13 [1, 2] : vector<1x16x128xf32> to vector<1xf32>
    %37 = vector.shape_cast %36 : vector<1xf32> to vector<1x1x1xf32>
    %38 = vector.extract %37[0, 0, 0] : f32 from vector<1x1x1xf32>
    %cst_14 = arith.constant -3.125000e-02 : f32
    %39 = arith.mulf %cst_14, %38 : f32
    %c0_15 = arith.constant 0 : index
    %c0_16 = arith.constant 0 : index
    %40 = vector.load %arg2[%c0_15, %c0_16] : memref<16x128xf32, #tpu.memory_space<vmem>>, vector<16x128xf32>
    %41 = arith.mulf %40, %26 : vector<16x128xf32>
    %42 = arith.addf %22, %41 : vector<16x128xf32>
    %c0_17 = arith.constant 0 : index
    %c0_18 = arith.constant 0 : index
    %43 = vector.load %arg10[%c0_17, %c0_18] : memref<64x16xbf16, #tpu.memory_space<vmem>>, vector<64x16xbf16>
    %44 = arith.truncf %42 : vector<16x128xf32> to vector<16x128xbf16>
    %cst_19 = arith.constant dense<0.000000e+00> : vector<64x128xf32>
    %45 = tpu.matmul %43, %44, %cst_19 {dimension_numbers = #tpu.dot_dimension_numbers<[1], [0], [0], [1], [0, 0, 1, 1], [], []>} : vector<64x16xbf16>, vector<16x128xbf16>, vector<64x128xf32> -> vector<64x128xf32>
    %c0_20 = arith.constant 0 : index
    %c0_21 = arith.constant 0 : index
    %46 = vector.load %arg11[%c0_20, %c0_21] : memref<64x1xf32, #tpu.memory_space<vmem>>, vector<64x1xf32>
    %47 = vector.broadcast %46 : vector<64x1xf32> to vector<64x128xf32>
    %48 = arith.addf %45, %47 : vector<64x128xf32>
    %cst_22 = arith.constant 0.000000e+00 : f32
    %49 = vector.broadcast %cst_22 : f32 to vector<64x128xf32>
    %50 = arith.maximumf %48, %49 : vector<64x128xf32>
    %51 = vector.extract_strided_slice %50 {offsets = [0, 0], sizes = [32, 128], strides = [1, 1]} : vector<64x128xf32> to vector<32x128xf32>
    %52 = vector.extract_strided_slice %50 {offsets = [32, 0], sizes = [32, 128], strides = [1, 1]} : vector<64x128xf32> to vector<32x128xf32>
    %c0_23 = arith.constant 0 : index
    %c0_24 = arith.constant 0 : index
    %53 = vector.load %arg12[%c0_23, %c0_24] : memref<16x32xbf16, #tpu.memory_space<vmem>>, vector<16x32xbf16>
    %54 = arith.truncf %51 : vector<32x128xf32> to vector<32x128xbf16>
    %cst_25 = arith.constant dense<0.000000e+00> : vector<16x128xf32>
    %55 = tpu.matmul %53, %54, %cst_25 {dimension_numbers = #tpu.dot_dimension_numbers<[1], [0], [0], [1], [0, 0, 1, 1], [], []>} : vector<16x32xbf16>, vector<32x128xbf16>, vector<16x128xf32> -> vector<16x128xf32>
    %c0_26 = arith.constant 0 : index
    %c0_27 = arith.constant 0 : index
    %56 = vector.load %arg13[%c0_26, %c0_27] : memref<16x1xf32, #tpu.memory_space<vmem>>, vector<16x1xf32>
    %57 = vector.broadcast %56 : vector<16x1xf32> to vector<16x128xf32>
    %58 = arith.addf %55, %57 : vector<16x128xf32>
    %59 = arith.negf %58 : vector<16x128xf32>
    %60 = math.exp %59 : vector<16x128xf32>
    %cst_28 = arith.constant 1.000000e+00 : f32
    %61 = vector.broadcast %cst_28 : f32 to vector<16x128xf32>
    %62 = arith.addf %61, %60 : vector<16x128xf32>
    %63 = arith.divf %61, %62 : vector<16x128xf32>
    %c0_29 = arith.constant 0 : index
    %c0_30 = arith.constant 0 : index
    %64 = vector.load %arg4[%c0_29, %c0_30] : memref<16x128xf32, #tpu.memory_space<vmem>>, vector<16x128xf32>
    %65 = arith.subf %63, %64 : vector<16x128xf32>
    %66 = arith.mulf %65, %65 : vector<16x128xf32>
    %67 = vector.broadcast %7 : vector<1x128xf32> to vector<16x128xf32>
    %68 = arith.mulf %66, %67 : vector<16x128xf32>
    %69 = vector.shape_cast %68 : vector<16x128xf32> to vector<1x16x128xf32>
    %cst_31 = arith.constant dense<0.000000e+00> : vector<1xf32>
    %70 = vector.multi_reduction <add>, %69, %cst_31 [1, 2] : vector<1x16x128xf32> to vector<1xf32>
    %71 = vector.shape_cast %70 : vector<1xf32> to vector<1x1x1xf32>
    %72 = vector.extract %71[0, 0, 0] : f32 from vector<1x1x1xf32>
    %c0_32 = arith.constant 0 : index
    %c0_33 = arith.constant 0 : index
    %73 = vector.load %arg14[%c0_32, %c0_33] : memref<32x32xbf16, #tpu.memory_space<vmem>>, vector<32x32xbf16>
    %74 = arith.truncf %52 : vector<32x128xf32> to vector<32x128xbf16>
    %cst_34 = arith.constant dense<0.000000e+00> : vector<32x128xf32>
    %75 = tpu.matmul %73, %74, %cst_34 {dimension_numbers = #tpu.dot_dimension_numbers<[1], [0], [0], [1], [0, 0, 1, 1], [], []>} : vector<32x32xbf16>, vector<32x128xbf16>, vector<32x128xf32> -> vector<32x128xf32>
    %c0_35 = arith.constant 0 : index
    %c0_36 = arith.constant 0 : index
    %76 = vector.load %arg15[%c0_35, %c0_36] : memref<32x1xf32, #tpu.memory_space<vmem>>, vector<32x1xf32>
    %77 = vector.broadcast %76 : vector<32x1xf32> to vector<32x128xf32>
    %78 = arith.addf %75, %77 : vector<32x128xf32>
    %79 = vector.extract_strided_slice %78 {offsets = [0, 0], sizes = [16, 128], strides = [1, 1]} : vector<32x128xf32> to vector<16x128xf32>
    %80 = vector.extract_strided_slice %78 {offsets = [16, 0], sizes = [16, 128], strides = [1, 1]} : vector<32x128xf32> to vector<16x128xf32>
    %cst_37 = arith.constant 5.000000e-01 : f32
    %81 = vector.broadcast %cst_37 : f32 to vector<16x128xf32>
    %82 = arith.mulf %81, %80 : vector<16x128xf32>
    %83 = math.exp %82 : vector<16x128xf32>
    %cst_38 = arith.constant 1.000000e+00 : f32
    %84 = vector.broadcast %cst_38 : f32 to vector<16x128xf32>
    %85 = arith.addf %84, %80 : vector<16x128xf32>
    %86 = arith.mulf %79, %79 : vector<16x128xf32>
    %87 = arith.subf %85, %86 : vector<16x128xf32>
    %88 = arith.mulf %83, %83 : vector<16x128xf32>
    %89 = arith.subf %87, %88 : vector<16x128xf32>
    %90 = vector.broadcast %7 : vector<1x128xf32> to vector<16x128xf32>
    %91 = arith.mulf %89, %90 : vector<16x128xf32>
    %92 = vector.shape_cast %91 : vector<16x128xf32> to vector<1x16x128xf32>
    %cst_39 = arith.constant dense<0.000000e+00> : vector<1xf32>
    %93 = vector.multi_reduction <add>, %92, %cst_39 [1, 2] : vector<1x16x128xf32> to vector<1xf32>
    %94 = vector.shape_cast %93 : vector<1xf32> to vector<1x1x1xf32>
    %95 = vector.extract %94[0, 0, 0] : f32 from vector<1x1x1xf32>
    %cst_40 = arith.constant -3.125000e-02 : f32
    %96 = arith.mulf %cst_40, %95 : f32
    %c0_41 = arith.constant 0 : index
    %c0_42 = arith.constant 0 : index
    %97 = vector.load %arg3[%c0_41, %c0_42] : memref<16x128xf32, #tpu.memory_space<vmem>>, vector<16x128xf32>
    %98 = arith.mulf %97, %83 : vector<16x128xf32>
    %99 = arith.addf %79, %98 : vector<16x128xf32>
    %c0_43 = arith.constant 0 : index
    %c0_44 = arith.constant 0 : index
    %100 = vector.load %arg20[%c0_43, %c0_44] : memref<16x128xf32, #tpu.memory_space<vmem>>, vector<16x128xf32>
    tpu.vector_store %arg20[%c0_43, %c0_44], %99 {strides = array<i32>} : memref<16x128xf32, #tpu.memory_space<vmem>>, vector<16x128xf32>,
    %c0_45 = arith.constant 0 : index
    %c0_46 = arith.constant 0 : index
    %101 = vector.load %arg16[%c0_45, %c0_46] : memref<32x16xbf16, #tpu.memory_space<vmem>>, vector<32x16xbf16>
    %102 = arith.truncf %99 : vector<16x128xf32> to vector<16x128xbf16>
    %cst_47 = arith.constant dense<0.000000e+00> : vector<32x128xf32>
    %103 = tpu.matmul %101, %102, %cst_47 {dimension_numbers = #tpu.dot_dimension_numbers<[1], [0], [0], [1], [0, 0, 1, 1], [], []>} : vector<32x16xbf16>, vector<16x128xbf16>, vector<32x128xf32> -> vector<32x128xf32>
    %c0_48 = arith.constant 0 : index
    %c0_49 = arith.constant 0 : index
    %104 = vector.load %arg17[%c0_48, %c0_49] : memref<32x1xf32, #tpu.memory_space<vmem>>, vector<32x1xf32>
    %105 = vector.broadcast %104 : vector<32x1xf32> to vector<32x128xf32>
    %106 = arith.addf %103, %105 : vector<32x128xf32>
    %cst_50 = arith.constant 0.000000e+00 : f32
    %107 = vector.broadcast %cst_50 : f32 to vector<32x128xf32>
    %108 = arith.maximumf %106, %107 : vector<32x128xf32>
    %c0_51 = arith.constant 0 : index
    %c0_52 = arith.constant 0 : index
    %109 = vector.load %arg18[%c0_51, %c0_52] : memref<16x32xbf16, #tpu.memory_space<vmem>>, vector<16x32xbf16>
    %110 = arith.truncf %108 : vector<32x128xf32> to vector<32x128xbf16>
    %cst_53 = arith.constant dense<0.000000e+00> : vector<16x128xf32>
    %111 = tpu.matmul %109, %110, %cst_53 {dimension_numbers = #tpu.dot_dimension_numbers<[1], [0], [0], [1], [0, 0, 1, 1], [], []>} : vector<16x32xbf16>, vector<32x128xbf16>, vector<16x128xf32> -> vector<16x128xf32>
    %c0_54 = arith.constant 0 : index
    %c0_55 = arith.constant 0 : index
    %112 = vector.load %arg19[%c0_54, %c0_55] : memref<16x1xf32, #tpu.memory_space<vmem>>, vector<16x1xf32>
    %113 = vector.broadcast %112 : vector<16x1xf32> to vector<16x128xf32>
    %114 = arith.addf %111, %113 : vector<16x128xf32>
    %115 = arith.negf %114 : vector<16x128xf32>
    %116 = math.exp %115 : vector<16x128xf32>
    %cst_56 = arith.constant 1.000000e+00 : f32
    %117 = vector.broadcast %cst_56 : f32 to vector<16x128xf32>
    %118 = arith.addf %117, %116 : vector<16x128xf32>
    %119 = arith.divf %117, %118 : vector<16x128xf32>
    %c0_57 = arith.constant 0 : index
    %c0_58 = arith.constant 0 : index
    %120 = vector.load %arg5[%c0_57, %c0_58] : memref<16x128xf32, #tpu.memory_space<vmem>>, vector<16x128xf32>
    %121 = arith.subf %119, %120 : vector<16x128xf32>
    %122 = arith.mulf %121, %121 : vector<16x128xf32>
    %123 = vector.broadcast %7 : vector<1x128xf32> to vector<16x128xf32>
    %124 = arith.mulf %122, %123 : vector<16x128xf32>
    %125 = vector.shape_cast %124 : vector<16x128xf32> to vector<1x16x128xf32>
    %cst_59 = arith.constant dense<0.000000e+00> : vector<1xf32>
    %126 = vector.multi_reduction <add>, %125, %cst_59 [1, 2] : vector<1x16x128xf32> to vector<1xf32>
    %127 = vector.shape_cast %126 : vector<1xf32> to vector<1x1x1xf32>
    %128 = vector.extract %127[0, 0, 0] : f32 from vector<1x1x1xf32>
    %129 = tpu.iota {dimensions = array<i32: 1>} : vector<1x8x128xi32>
    %c0_i32 = arith.constant 0 : i32
    %130 = vector.broadcast %c0_i32 : i32 to vector<1x8x128xi32>
    %131 = arith.cmpi eq, %129, %130 : vector<1x8x128xi32>
    %cst_60 = arith.constant 0.000000e+00 : f32
    %132 = vector.broadcast %39 : f32 to vector<1x8x128xf32>
    %133 = vector.broadcast %cst_60 : f32 to vector<1x8x128xf32>
    %134 = arith.select %131, %132, %133 : vector<1x8x128xi1>, vector<1x8x128xf32>
    %c1_i32 = arith.constant 1 : i32
    %135 = vector.broadcast %c1_i32 : i32 to vector<1x8x128xi32>
    %136 = arith.cmpi eq, %129, %135 : vector<1x8x128xi32>
    %cst_61 = arith.constant 0.000000e+00 : f32
    %137 = vector.broadcast %72 : f32 to vector<1x8x128xf32>
    %138 = vector.broadcast %cst_61 : f32 to vector<1x8x128xf32>
    %139 = arith.select %136, %137, %138 : vector<1x8x128xi1>, vector<1x8x128xf32>
    %140 = arith.addf %134, %139 : vector<1x8x128xf32>
    %c2_i32 = arith.constant 2 : i32
    %141 = vector.broadcast %c2_i32 : i32 to vector<1x8x128xi32>
    %142 = arith.cmpi eq, %129, %141 : vector<1x8x128xi32>
    %cst_62 = arith.constant 0.000000e+00 : f32
    %143 = vector.broadcast %96 : f32 to vector<1x8x128xf32>
    %144 = vector.broadcast %cst_62 : f32 to vector<1x8x128xf32>
    %145 = arith.select %142, %143, %144 : vector<1x8x128xi1>, vector<1x8x128xf32>
    %146 = arith.addf %140, %145 : vector<1x8x128xf32>
    %c3_i32 = arith.constant 3 : i32
    %147 = vector.broadcast %c3_i32 : i32 to vector<1x8x128xi32>
    %148 = arith.cmpi eq, %129, %147 : vector<1x8x128xi32>
    %cst_63 = arith.constant 0.000000e+00 : f32
    %149 = vector.broadcast %128 : f32 to vector<1x8x128xf32>
    %150 = vector.broadcast %cst_63 : f32 to vector<1x8x128xf32>
    %151 = arith.select %148, %149, %150 : vector<1x8x128xi1>, vector<1x8x128xf32>
    %152 = arith.addf %146, %151 : vector<1x8x128xf32>
    %c0_64 = arith.constant 0 : index
    %c0_65 = arith.constant 0 : index
    %c0_66 = arith.constant 0 : index
    %153 = vector.load %arg21[%c0_64, %c0_65, %c0_66] : memref<1x8x128xf32, #tpu.memory_space<vmem>>, vector<1x8x128xf32>
    tpu.vector_store %arg21[%c0_64, %c0_65, %c0_66], %152 {strides = array<i32>} : memref<1x8x128xf32, #tpu.memory_space<vmem>>, vector<1x8x128xf32>,
    return
  }
  func.func @transform_0(%arg0: i32) -> (i32, i32) {
    %c0_i32 = arith.constant 0 : i32
    %c0_i32_0 = arith.constant 0 : i32
    return %c0_i32, %arg0 : i32, i32
  }
  func.func @transform_1(%arg0: i32) -> (i32, i32) {
    %c0_i32 = arith.constant 0 : i32
    %c0_i32_0 = arith.constant 0 : i32
    return %c0_i32, %arg0 : i32, i32
  }
  func.func @transform_2(%arg0: i32) -> (i32, i32) {
    %c0_i32 = arith.constant 0 : i32
    %c0_i32_0 = arith.constant 0 : i32
    return %c0_i32, %arg0 : i32, i32
  }
  func.func @transform_3(%arg0: i32) -> (i32, i32) {
    %c0_i32 = arith.constant 0 : i32
    %c0_i32_0 = arith.constant 0 : i32
    return %c0_i32, %arg0 : i32, i32
  }
  func.func @transform_4(%arg0: i32) -> (i32, i32) {
    %c0_i32 = arith.constant 0 : i32
    %c0_i32_0 = arith.constant 0 : i32
    return %c0_i32, %arg0 : i32, i32
  }
  func.func @transform_5(%arg0: i32) -> (i32, i32) {
    %c0_i32 = arith.constant 0 : i32
    %c0_i32_0 = arith.constant 0 : i32
    %c0_i32_1 = arith.constant 0 : i32
    return %c0_i32, %c0_i32_0 : i32, i32
  }
  func.func @transform_6(%arg0: i32) -> (i32, i32) {
    %c0_i32 = arith.constant 0 : i32
    %c0_i32_0 = arith.constant 0 : i32
    %c0_i32_1 = arith.constant 0 : i32
    return %c0_i32, %c0_i32_0 : i32, i32
  }
  func.func @transform_7(%arg0: i32) -> (i32, i32) {
    %c0_i32 = arith.constant 0 : i32
    %c0_i32_0 = arith.constant 0 : i32
    %c0_i32_1 = arith.constant 0 : i32
    return %c0_i32, %c0_i32_0 : i32, i32
  }
  func.func @transform_8(%arg0: i32) -> (i32, i32) {
    %c0_i32 = arith.constant 0 : i32
    %c0_i32_0 = arith.constant 0 : i32
    %c0_i32_1 = arith.constant 0 : i32
    return %c0_i32, %c0_i32_0 : i32, i32
  }
  func.func @transform_9(%arg0: i32) -> (i32, i32) {
    %c0_i32 = arith.constant 0 : i32
    %c0_i32_0 = arith.constant 0 : i32
    %c0_i32_1 = arith.constant 0 : i32
    return %c0_i32, %c0_i32_0 : i32, i32
  }
  func.func @transform_10(%arg0: i32) -> (i32, i32) {
    %c0_i32 = arith.constant 0 : i32
    %c0_i32_0 = arith.constant 0 : i32
    %c0_i32_1 = arith.constant 0 : i32
    return %c0_i32, %c0_i32_0 : i32, i32
  }
  func.func @transform_11(%arg0: i32) -> (i32, i32) {
    %c0_i32 = arith.constant 0 : i32
    %c0_i32_0 = arith.constant 0 : i32
    %c0_i32_1 = arith.constant 0 : i32
    return %c0_i32, %c0_i32_0 : i32, i32
  }
  func.func @transform_12(%arg0: i32) -> (i32, i32) {
    %c0_i32 = arith.constant 0 : i32
    %c0_i32_0 = arith.constant 0 : i32
    %c0_i32_1 = arith.constant 0 : i32
    return %c0_i32, %c0_i32_0 : i32, i32
  }
  func.func @transform_13(%arg0: i32) -> (i32, i32) {
    %c0_i32 = arith.constant 0 : i32
    %c0_i32_0 = arith.constant 0 : i32
    %c0_i32_1 = arith.constant 0 : i32
    return %c0_i32, %c0_i32_0 : i32, i32
  }
  func.func @transform_14(%arg0: i32) -> (i32, i32) {
    %c0_i32 = arith.constant 0 : i32
    %c0_i32_0 = arith.constant 0 : i32
    %c0_i32_1 = arith.constant 0 : i32
    return %c0_i32, %c0_i32_0 : i32, i32
  }
  func.func @transform_15(%arg0: i32) -> (i32, i32) {
    %c0_i32 = arith.constant 0 : i32
    %c0_i32_0 = arith.constant 0 : i32
    %c0_i32_1 = arith.constant 0 : i32
    return %c0_i32, %c0_i32_0 : i32, i32
  }
  func.func @transform_16(%arg0: i32) -> (i32, i32) {
    %c0_i32 = arith.constant 0 : i32
    %c0_i32_0 = arith.constant 0 : i32
    %c0_i32_1 = arith.constant 0 : i32
    return %c0_i32, %c0_i32_0 : i32, i32
  }
  func.func @transform_17(%arg0: i32) -> (i32, i32) {
    %c0_i32 = arith.constant 0 : i32
    %c0_i32_0 = arith.constant 0 : i32
    %c0_i32_1 = arith.constant 0 : i32
    return %c0_i32, %c0_i32_0 : i32, i32
  }
  func.func @transform_18(%arg0: i32) -> (i32, i32) {
    %c0_i32 = arith.constant 0 : i32
    %c0_i32_0 = arith.constant 0 : i32
    %c0_i32_1 = arith.constant 0 : i32
    return %c0_i32, %c0_i32_0 : i32, i32
  }
  func.func @transform_19(%arg0: i32) -> (i32, i32) {
    %c0_i32 = arith.constant 0 : i32
    %c0_i32_0 = arith.constant 0 : i32
    return %c0_i32, %arg0 : i32, i32
  }
  func.func @transform_20(%arg0: i32) -> (i32, i32, i32) {
    %c0_i32 = arith.constant 0 : i32
    %c0_i32_0 = arith.constant 0 : i32
    %c0_i32_1 = arith.constant 0 : i32
    return %arg0, %c0_i32, %c0_i32_0 : i32, i32, i32
  }
}

</mosaic_0001>

<llo_original>
// kernel: tpu_custom_call.1
$region0: #{tpu_custom_call.1}
  #allocation0 [shape = 'u32[]', space=smem, size = 0x4, offset = 0x4, fixed_abs, tag = 'smem constant byte address 0x4 - core index']
  #allocation1 [shape = 'u32[144,128]{1,0:T(1,128)}', space=vmem, size = 0x12000, scoped, tag = 'internal scratch']
  %s0 = inlined_call_operand.vmem [shape: bf16[32,128], index: 0, kind: input, shape index: {}]
  %s1 = inlined_call_operand.vmem [shape: f32[16,128], index: 1, kind: input, shape index: {}]
  %s2 = inlined_call_operand.vmem [shape: f32[16,128], index: 2, kind: input, shape index: {}]
  %s3 = inlined_call_operand.vmem [shape: f32[16,128], index: 3, kind: input, shape index: {}]
  %s4 = inlined_call_operand.vmem [shape: f32[16,128], index: 4, kind: input, shape index: {}]
  %s5 = inlined_call_operand.vmem [shape: bf16[32,32], index: 5, kind: input, shape index: {}]
  %s6 = inlined_call_operand.vmem [shape: f32[32,1], index: 6, kind: input, shape index: {}]
  %s7 = inlined_call_operand.vmem [shape: bf16[32,32], index: 7, kind: input, shape index: {}]
  %s8 = inlined_call_operand.vmem [shape: f32[32,1], index: 8, kind: input, shape index: {}]
  %s9 = inlined_call_operand.vmem [shape: bf16[64,16], index: 9, kind: input, shape index: {}]
  %s10 = inlined_call_operand.vmem [shape: f32[64,1], index: 10, kind: input, shape index: {}]
  %s11 = inlined_call_operand.vmem [shape: bf16[16,32], index: 11, kind: input, shape index: {}]
  %s12 = inlined_call_operand.vmem [shape: f32[16,1], index: 12, kind: input, shape index: {}]
  %s13 = inlined_call_operand.vmem [shape: bf16[32,32], index: 13, kind: input, shape index: {}]
  %s14 = inlined_call_operand.vmem [shape: f32[32,1], index: 14, kind: input, shape index: {}]
  %s15 = inlined_call_operand.vmem [shape: bf16[32,16], index: 15, kind: input, shape index: {}]
  %s16 = inlined_call_operand.vmem [shape: f32[32,1], index: 16, kind: input, shape index: {}]
  %s17 = inlined_call_operand.vmem [shape: bf16[16,32], index: 17, kind: input, shape index: {}]
  %s18 = inlined_call_operand.vmem [shape: f32[16,1], index: 18, kind: input, shape index: {}]
  %s19 = inlined_call_operand.hbm [shape: f32[16,128], index: 19, kind: output, shape index: {0}]
  %s20 = inlined_call_operand.hbm [shape: f32[1,8,128], index: 20, kind: output, shape index: {1}]
  %21 = xla_tuple %s19, %s20
  %s22 = sld [smem:[#allocation0]]
  $region94: #{tpu_custom_call.1} parent=0
    _
  %s24 = ssub.s32 1, %s22
  %s25 = scalar_select 0, %s24, %s22
  $region1: #{tpu_custom_call.1} parent=0
    #allocation2 [shape = 'u8[8192]{0}', space=vmem, size = 0x2000, scoped, tag = 'output window, operand 0, single buffered']
    #allocation3 [shape = 's32[1]{0}', space=sflag, size = 0x4, scoped, tag = 'scoped memory for tpu_custom_call.1']
    #allocation4 [shape = 'u8[4096]{0}', space=vmem, size = 0x1000, scoped, tag = 'output window, operand 1, single buffered']
    #allocation5 [shape = 's32[1]{0}', space=sflag, size = 0x4, scoped, tag = 'scoped memory for tpu_custom_call.1']
    %26 = vsyncpa [#allocation3], 0
    %27 = vsyncpa [#allocation5], 0
    // Predicated region
    $region2: #{tpu_custom_call.1} parent=1 // pred_check
      _
    $region3: #{tpu_custom_call.1} parent=1 // pred_check_branch
      %29 = sbr.rel (0) target = $region5
    $region4: #{tpu_custom_call.1} parent=1 // pred_region
      _
    $region5: #{tpu_custom_call.1} parent=1 // pred_fallthru
      _
    // Predicated region
    $region6: #{tpu_custom_call.1} parent=1 // pred_check
      _
    $region7: #{tpu_custom_call.1} parent=1 // pred_check_branch
      %31 = sbr.rel (0) target = $region9
    $region8: #{tpu_custom_call.1} parent=1 // pred_region
      _
    $region9: #{tpu_custom_call.1} parent=1 // pred_fallthru
      _
    // Predicated region
    $region10: #{tpu_custom_call.1} parent=1 // pred_check
      _
    $region11: #{tpu_custom_call.1} parent=1 // pred_check_branch
      %33 = sbr.rel (0) target = $region13
    $region12: #{tpu_custom_call.1} parent=1 // pred_region
      _
    $region13: #{tpu_custom_call.1} parent=1 // pred_fallthru
      _
    // Predicated region
    $region14: #{tpu_custom_call.1} parent=1 // pred_check
      _
    $region15: #{tpu_custom_call.1} parent=1 // pred_check_branch
      %35 = sbr.rel (0) target = $region17
    $region16: #{tpu_custom_call.1} parent=1 // pred_region
      _
    $region17: #{tpu_custom_call.1} parent=1 // pred_fallthru
      _
    // Predicated region
    $region18: #{tpu_custom_call.1} parent=1 // pred_check
      _
    $region19: #{tpu_custom_call.1} parent=1 // pred_check_branch
      %37 = sbr.rel (0) target = $region21
    $region20: #{tpu_custom_call.1} parent=1 // pred_region
      _
    $region21: #{tpu_custom_call.1} parent=1 // pred_fallthru
      _
    // Predicated region
    $region22: #{tpu_custom_call.1} parent=1 // pred_check
      _
    $region23: #{tpu_custom_call.1} parent=1 // pred_check_branch
      %39 = sbr.rel (0) target = $region25
    $region24: #{tpu_custom_call.1} parent=1 // pred_region
      _
    $region25: #{tpu_custom_call.1} parent=1 // pred_fallthru
      _
    // Predicated region
    $region26: #{tpu_custom_call.1} parent=1 // pred_check
      _
    $region27: #{tpu_custom_call.1} parent=1 // pred_check_branch
      %41 = sbr.rel (0) target = $region29
    $region28: #{tpu_custom_call.1} parent=1 // pred_region
      _
    $region29: #{tpu_custom_call.1} parent=1 // pred_fallthru
      _
    // Predicated region
    $region30: #{tpu_custom_call.1} parent=1 // pred_check
      _
    $region31: #{tpu_custom_call.1} parent=1 // pred_check_branch
      %43 = sbr.rel (0) target = $region33
    $region32: #{tpu_custom_call.1} parent=1 // pred_region
      _
    $region33: #{tpu_custom_call.1} parent=1 // pred_fallthru
      _
    // Predicated region
    $region34: #{tpu_custom_call.1} parent=1 // pred_check
      _
    $region35: #{tpu_custom_call.1} parent=1 // pred_check_branch
      %45 = sbr.rel (0) target = $region37
    $region36: #{tpu_custom_call.1} parent=1 // pred_region
      _
    $region37: #{tpu_custom_call.1} parent=1 // pred_fallthru
      _
    // Predicated region
    $region38: #{tpu_custom_call.1} parent=1 // pred_check
      _
    $region39: #{tpu_custom_call.1} parent=1 // pred_check_branch
      %47 = sbr.rel (0) target = $region41
    $region40: #{tpu_custom_call.1} parent=1 // pred_region
      _
    $region41: #{tpu_custom_call.1} parent=1 // pred_fallthru
      _
    // Predicated region
    $region42: #{tpu_custom_call.1} parent=1 // pred_check
      _
    $region43: #{tpu_custom_call.1} parent=1 // pred_check_branch
      %49 = sbr.rel (0) target = $region45
    $region44: #{tpu_custom_call.1} parent=1 // pred_region
      _
    $region45: #{tpu_custom_call.1} parent=1 // pred_fallthru
      _
    // Predicated region
    $region46: #{tpu_custom_call.1} parent=1 // pred_check
      _
    $region47: #{tpu_custom_call.1} parent=1 // pred_check_branch
      %51 = sbr.rel (0) target = $region49
    $region48: #{tpu_custom_call.1} parent=1 // pred_region
      _
    $region49: #{tpu_custom_call.1} parent=1 // pred_fallthru
      _
    // Predicated region
    $region50: #{tpu_custom_call.1} parent=1 // pred_check
      _
    $region51: #{tpu_custom_call.1} parent=1 // pred_check_branch
      %53 = sbr.rel (0) target = $region53
    $region52: #{tpu_custom_call.1} parent=1 // pred_region
      _
    $region53: #{tpu_custom_call.1} parent=1 // pred_fallthru
      _
    // Predicated region
    $region54: #{tpu_custom_call.1} parent=1 // pred_check
      _
    $region55: #{tpu_custom_call.1} parent=1 // pred_check_branch
      %55 = sbr.rel (0) target = $region57
    $region56: #{tpu_custom_call.1} parent=1 // pred_region
      _
    $region57: #{tpu_custom_call.1} parent=1 // pred_fallthru
      _
    // Predicated region
    $region58: #{tpu_custom_call.1} parent=1 // pred_check
      _
    $region59: #{tpu_custom_call.1} parent=1 // pred_check_branch
      %57 = sbr.rel (0) target = $region61
    $region60: #{tpu_custom_call.1} parent=1 // pred_region
      _
    $region61: #{tpu_custom_call.1} parent=1 // pred_fallthru
      _
    // Predicated region
    $region62: #{tpu_custom_call.1} parent=1 // pred_check
      _
    $region63: #{tpu_custom_call.1} parent=1 // pred_check_branch
      %59 = sbr.rel (0) target = $region65
    $region64: #{tpu_custom_call.1} parent=1 // pred_region
      _
    $region65: #{tpu_custom_call.1} parent=1 // pred_fallthru
      _
    // Predicated region
    $region66: #{tpu_custom_call.1} parent=1 // pred_check
      _
    $region67: #{tpu_custom_call.1} parent=1 // pred_check_branch
      %61 = sbr.rel (0) target = $region69
    $region68: #{tpu_custom_call.1} parent=1 // pred_region
      _
    $region69: #{tpu_custom_call.1} parent=1 // pred_fallthru
      _
    // Predicated region
    $region70: #{tpu_custom_call.1} parent=1 // pred_check
      _
    $region71: #{tpu_custom_call.1} parent=1 // pred_check_branch
      %63 = sbr.rel (0) target = $region73
    $region72: #{tpu_custom_call.1} parent=1 // pred_region
      _
    $region73: #{tpu_custom_call.1} parent=1 // pred_fallthru
      _
    // Predicated region
    $region74: #{tpu_custom_call.1} parent=1 // pred_check
      _
    $region75: #{tpu_custom_call.1} parent=1 // pred_check_branch
      %65 = sbr.rel (0) target = $region77
    $region76: #{tpu_custom_call.1} parent=1 // pred_region
      _
    $region77: #{tpu_custom_call.1} parent=1 // pred_fallthru
      _
    %v67 = vlaneseq
    %v68 = vand.u32 %v67, 127
    %s69 = smul.u32 0, 128
    %v70 = vstv %s69
    %v71 = vadd.s32 %v70, %v68
    %vm72 = vcmp.lt.s32.totalorder %v71, 16
    %v73 = vsel %vm72, 1, 0
    %v74 = vcvt.s32.f32 %v73
    %v75 = vld [vmem:[%s0] sm:$0xf]
    %v76 = vld [vmem:[%s0 + $0x4] sm:$0xf]
    %v77 = vld [vmem:[%s0 + $0x8] sm:$0xf]
    %v78 = vld [vmem:[%s0 + $0xc] sm:$0xf]
    %v79 = vld [vmem:[%s5] sm:$0xf]
    %v80 = vld [vmem:[%s5 + $0x4] sm:$0xf]
    %v81 = vld [vmem:[%s5 + $0x8] sm:$0xf]
    %v82 = vld [vmem:[%s5 + $0xc] sm:$0xf]
    %v83 = vld [vmem:[%s6] sm:$0xff]
    %v84 = vld [vmem:[%s6 + $0x8] sm:$0xff]
    %v85 = vld [vmem:[%s6 + $0x10] sm:$0xff]
    %v86 = vld [vmem:[%s6 + $0x18] sm:$0xff]
    %88 = vset.pattern.permute.xlu0 0
    %89 = vperm.xlu0 %88, %v83
    %v90 = vpop.permute.xlu0 %89
    %93 = vset.pattern.permute.xlu0 0
    %94 = vperm.xlu0 %93, %v84
    %v95 = vpop.permute.xlu0 %94
    %98 = vset.pattern.permute.xlu0 0
    %99 = vperm.xlu0 %98, %v85
    %v100 = vpop.permute.xlu0 %99
    %103 = vset.pattern.permute.xlu0 0
    %104 = vperm.xlu0 %103, %v86
    %v105 = vpop.permute.xlu0 %104
    %v111 = vunpack.c.l.b16 %v79
    %v112 = vunpack.c.l.b16 %v80
    %v113 = vunpack.c.l.b16 %v81
    %v114 = vunpack.c.l.b16 %v82
    %v115 = vpack.c.b16 %v112, %v111
    %v116 = vpack.c.b16 %v114, %v113
    %v121 = vunpack.c.l.b16 %v75
    %v122 = vunpack.c.l.b16 %v76
    %v123 = vunpack.c.l.b16 %v77
    %v124 = vunpack.c.l.b16 %v78
    %v125 = vpack.c.b16 %v122, %v121
    %v126 = vpack.c.b16 %v124, %v123
    %vm129 = vcmask 261120
    %v131 = vsel %vm129, %v115, 0
    %v134 = vsel %vm129, %v116, 0
    %136 = vmatprep.subr.bf16.mxu0 0
    %137 = vmatpush1.bf16.msra.mxu0 0
    %138 = vmatprep.subr.bf16.mxu0 0
    %139 = vmatpush1.bf16.msra.mxu0 0
    %140 = vmatprep.subr.bf16.mxu0 0
    %141 = vmatpush1.bf16.msra.mxu0 0
    %142 = vmatprep.subr.bf16.mxu0 0
    %143 = vmatpush1.bf16.msra.mxu0 0
    %144 = vmatprep.subr.bf16.mxu0 0
    %145 = vmatpush1.bf16.msra.mxu0 0
    %146 = vmatprep.subr.bf16.mxu0 0
    %147 = vmatpush1.bf16.msra.mxu0 0
    %148 = vmatprep.subr.bf16.mxu0 0
    %149 = vmatpush1.bf16.msra.mxu0 %v126
    %150 = vmatprep.subr.bf16.mxu0 0
    %151 = vmatpush1.bf16.msra.mxu0 %v125
    %152 = vmatprep.subr.bf16.mxu0 0
    %153 = vmatpush2.bf16.msra.mxu0 0
    %154 = vmatprep.subr.bf16.mxu0 0
    %155 = vmatpush2.bf16.msra.mxu0 0
    %156 = vmatprep.subr.bf16.mxu0 0
    %157 = vmatpush2.bf16.msra.mxu0 0
    %158 = vmatprep.subr.bf16.mxu0 0
    %159 = vmatpush2.bf16.msra.mxu0 0
    %160 = vmatprep.subr.bf16.mxu0 0
    %161 = vmatpush2.bf16.msra.mxu0 0
    %162 = vmatprep.subr.bf16.mxu0 0
    %163 = vmatpush2.bf16.msra.mxu0 0
    %164 = vmatprep.subr.bf16.mxu0 0
    %165 = vmatpush2.bf16.msra.mxu0 0
    %166 = vmatprep.subr.bf16.mxu0 0
    %167 = vmatpush2.bf16.msra.mxu0 0
    %168 = vmatprep.mubr.bf16.mxu0 0
    %169 = vmatmul.mubr.bf16.gmra.mxu0 %v131
    %v170 = vpop.f32.mrf.mxu0
    %v171 = vadd.f32 %v90, %v170
    %v172 = vpop.f32.mrf.mxu0
    %v173 = vpop.f32.mrf.mxu0
    %v174 = vadd.f32 %v95, %v173
    %v175 = vpop.f32.mrf.mxu0
    %176 = vmatprep.mubr.bf16.mxu0 0
    %177 = vmatmul.mubr.bf16.gmra.mxu0 %v134
    %v178 = vpop.f32.mrf.mxu0
    %v179 = vadd.f32 %v100, %v178
    %v180 = vpop.f32.mrf.mxu0
    %v181 = vpop.f32.mrf.mxu0
    %v182 = vadd.f32 %v105, %v181
    %v183 = vpop.f32.mrf.mxu0
    %184 = vdwg.mxu0
    %v185 = vmax.f32 %v171, 0.0
    %v186 = vmax.f32 %v174, 0.0
    %v187 = vmax.f32 %v179, 0.0
    %v188 = vmax.f32 %v182, 0.0
    %v189 = vld [vmem:[%s7] sm:$0xf]
    %v190 = vld [vmem:[%s7 + $0x4] sm:$0xf]
    %v191 = vld [vmem:[%s7 + $0x8] sm:$0xf]
    %v192 = vld [vmem:[%s7 + $0xc] sm:$0xf]
    %v193 = vpack.c.bf16 %v186, %v185
    %v194 = vpack.c.bf16 %v188, %v187
    %v195 = vld [vmem:[%s8] sm:$0xff]
    %v196 = vld [vmem:[%s8 + $0x8] sm:$0xff]
    %v197 = vld [vmem:[%s8 + $0x10] sm:$0xff]
    %v198 = vld [vmem:[%s8 + $0x18] sm:$0xff]
    %200 = vset.pattern.permute.xlu0 0
    %201 = vperm.xlu0 %200, %v195
    %v202 = vpop.permute.xlu0 %201
    %205 = vset.pattern.permute.xlu0 0
    %206 = vperm.xlu0 %205, %v196
    %v207 = vpop.permute.xlu0 %206
    %210 = vset.pattern.permute.xlu0 0
    %211 = vperm.xlu0 %210, %v197
    %v212 = vpop.permute.xlu0 %211
    %215 = vset.pattern.permute.xlu0 0
    %216 = vperm.xlu0 %215, %v198
    %v217 = vpop.permute.xlu0 %216
    %v223 = vunpack.c.l.b16 %v189
    %v224 = vunpack.c.l.b16 %v190
    %v225 = vunpack.c.l.b16 %v191
    %v226 = vunpack.c.l.b16 %v192
    %v227 = vpack.c.b16 %v224, %v223
    %v228 = vpack.c.b16 %v226, %v225
    %v230 = vsel %vm129, %v227, 0
    %v233 = vsel %vm129, %v228, 0
    %235 = vmatprep.subr.bf16.mxu0 0
    %236 = vmatpush1.bf16.msra.mxu0 0
    %237 = vmatprep.subr.bf16.mxu0 0
    %238 = vmatpush1.bf16.msra.mxu0 0
    %239 = vmatprep.subr.bf16.mxu0 0
    %240 = vmatpush1.bf16.msra.mxu0 0
    %241 = vmatprep.subr.bf16.mxu0 0
    %242 = vmatpush1.bf16.msra.mxu0 0
    %243 = vmatprep.subr.bf16.mxu0 0
    %244 = vmatpush1.bf16.msra.mxu0 0
    %245 = vmatprep.subr.bf16.mxu0 0
    %246 = vmatpush1.bf16.msra.mxu0 0
    %247 = vmatprep.subr.bf16.mxu0 0
    %248 = vmatpush1.bf16.msra.mxu0 %v194
    %249 = vmatprep.subr.bf16.mxu0 0
    %250 = vmatpush1.bf16.msra.mxu0 %v193
    %251 = vmatprep.subr.bf16.mxu0 0
    %252 = vmatpush2.bf16.msra.mxu0 0
    %253 = vmatprep.subr.bf16.mxu0 0
    %254 = vmatpush2.bf16.msra.mxu0 0
    %255 = vmatprep.subr.bf16.mxu0 0
    %256 = vmatpush2.bf16.msra.mxu0 0
    %257 = vmatprep.subr.bf16.mxu0 0
    %258 = vmatpush2.bf16.msra.mxu0 0
    %259 = vmatprep.subr.bf16.mxu0 0
    %260 = vmatpush2.bf16.msra.mxu0 0
    %261 = vmatprep.subr.bf16.mxu0 0
    %262 = vmatpush2.bf16.msra.mxu0 0
    %263 = vmatprep.subr.bf16.mxu0 0
    %264 = vmatpush2.bf16.msra.mxu0 0
    %265 = vmatprep.subr.bf16.mxu0 0
    %266 = vmatpush2.bf16.msra.mxu0 0
    %267 = vmatprep.mubr.bf16.mxu0 0
    %268 = vmatmul.mubr.bf16.gmra.mxu0 %v230
    %v269 = vpop.f32.mrf.mxu0
    %v270 = vadd.f32 %v202, %v269
    %v271 = vpop.f32.mrf.mxu0
    %v272 = vpop.f32.mrf.mxu0
    %v273 = vadd.f32 %v207, %v272
    %v274 = vpop.f32.mrf.mxu0
    %275 = vmatprep.mubr.bf16.mxu0 0
    %276 = vmatmul.mubr.bf16.gmra.mxu0 %v233
    %v277 = vpop.f32.mrf.mxu0
    %v278 = vadd.f32 %v212, %v277
    %v279 = vpop.f32.mrf.mxu0
    %v280 = vpop.f32.mrf.mxu0
    %v281 = vadd.f32 %v217, %v280
    %v282 = vpop.f32.mrf.mxu0
    %283 = vdwg.mxu0
    %v284 = vmul.f32 %v278, 0.5
    %v285 = vmul.f32 %v281, 0.5
    %v286 = vmul.f32 %v284, 1.442695
    %v287 = vpow.pop %v286
    %v288 = vmul.f32 %v285, 1.442695
    %v289 = vpow.pop %v288
    %v290 = vadd.f32 %v278, 1.0
    %v291 = vadd.f32 %v281, 1.0
    %v292 = vmul.f32 %v270, %v270
    %v293 = vmul.f32 %v273, %v273
    %v294 = vsub.f32 %v290, %v292
    %v295 = vsub.f32 %v291, %v293
    %v296 = vmul.f32 %v287, %v287
    %v297 = vmul.f32 %v289, %v289
    %v298 = vsub.f32 %v294, %v296
    %v299 = vsub.f32 %v295, %v297
    %v300 = vmul.f32 %v298, %v74
    %v301 = vmul.f32 %v299, %v74
    %v302 = vadd.f32 %v300, %v301
    %303 = vadd.xlane.f32.xlu0 %v302
    %v304 = vpop.xlane.xlu0 %303
    %v305 = vrot.slane %v304, 4
    %v306 = vadd.f32 %v304, %v305
    %v307 = vrot.slane %v306, 2
    %v308 = vadd.f32 %v306, %v307
    %v309 = vrot.slane %v308, 1
    %v310 = vadd.f32 %v308, %v309
    %s311 = vtos %v310
    %s312 = smul.f32 %s311, -0.03125
    %v313 = vld [vmem:[%s1] sm:$0xff]
    %v314 = vld [vmem:[%s1 + $0x8] sm:$0xff]
    %v315 = vmul.f32 %v313, %v287
    %v316 = vmul.f32 %v314, %v289
    %v317 = vadd.f32 %v270, %v315
    %v318 = vadd.f32 %v273, %v316
    %v319 = vld [vmem:[%s9] sm:$0xf]
    %v320 = vld [vmem:[%s9 + $0x4] sm:$0xf]
    %v321 = vld [vmem:[%s9 + $0x8] sm:$0xf]
    %v322 = vld [vmem:[%s9 + $0xc] sm:$0xf]
    %v323 = vld [vmem:[%s9 + $0x10] sm:$0xf]
    %v324 = vld [vmem:[%s9 + $0x14] sm:$0xf]
    %v325 = vld [vmem:[%s9 + $0x18] sm:$0xf]
    %v326 = vld [vmem:[%s9 + $0x1c] sm:$0xf]
    %v327 = vpack.c.bf16 %v318, %v317
    %v328 = vld [vmem:[%s10] sm:$0xff]
    %v329 = vld [vmem:[%s10 + $0x8] sm:$0xff]
    %v330 = vld [vmem:[%s10 + $0x10] sm:$0xff]
    %v331 = vld [vmem:[%s10 + $0x18] sm:$0xff]
    %v332 = vld [vmem:[%s10 + $0x20] sm:$0xff]
    %v333 = vld [vmem:[%s10 + $0x28] sm:$0xff]
    %v334 = vld [vmem:[%s10 + $0x30] sm:$0xff]
    %v335 = vld [vmem:[%s10 + $0x38] sm:$0xff]
    %337 = vset.pattern.permute.xlu0 0
    %338 = vperm.xlu0 %337, %v328
    %v339 = vpop.permute.xlu0 %338
    %342 = vset.pattern.permute.xlu0 0
    %343 = vperm.xlu0 %342, %v329
    %v344 = vpop.permute.xlu0 %343
    %347 = vset.pattern.permute.xlu0 0
    %348 = vperm.xlu0 %347, %v330
    %v349 = vpop.permute.xlu0 %348
    %352 = vset.pattern.permute.xlu0 0
    %353 = vperm.xlu0 %352, %v331
    %v354 = vpop.permute.xlu0 %353
    %357 = vset.pattern.permute.xlu0 0
    %358 = vperm.xlu0 %357, %v332
    %v359 = vpop.permute.xlu0 %358
    %362 = vset.pattern.permute.xlu0 0
    %363 = vperm.xlu0 %362, %v333
    %v364 = vpop.permute.xlu0 %363
    %367 = vset.pattern.permute.xlu0 0
    %368 = vperm.xlu0 %367, %v334
    %v369 = vpop.permute.xlu0 %368
    %372 = vset.pattern.permute.xlu0 0
    %373 = vperm.xlu0 %372, %v335
    %v374 = vpop.permute.xlu0 %373
    %v384 = vunpack.c.l.b16 %v319
    %v385 = vunpack.c.l.b16 %v320
    %v386 = vunpack.c.l.b16 %v321
    %v387 = vunpack.c.l.b16 %v322
    %v388 = vunpack.c.l.b16 %v323
    %v389 = vunpack.c.l.b16 %v324
    %v390 = vunpack.c.l.b16 %v325
    %v391 = vunpack.c.l.b16 %v326
    %v392 = vpack.c.b16 %v385, %v384
    %v393 = vpack.c.b16 %v387, %v386
    %v394 = vpack.c.b16 %v389, %v388
    %v395 = vpack.c.b16 %v391, %v390
    %vm396 = vcmask 130048
    %v398 = vsel %vm396, %v392, 0
    %v401 = vsel %vm396, %v393, 0
    %v404 = vsel %vm396, %v394, 0
    %v407 = vsel %vm396, %v395, 0
    %409 = vmatprep.subr.bf16.mxu0 0
    %410 = vmatpush1.bf16.msra.mxu0 0
    %411 = vmatprep.subr.bf16.mxu0 0
    %412 = vmatpush1.bf16.msra.mxu0 0
    %413 = vmatprep.subr.bf16.mxu0 0
    %414 = vmatpush1.bf16.msra.mxu0 0
    %415 = vmatprep.subr.bf16.mxu0 0
    %416 = vmatpush1.bf16.msra.mxu0 0
    %417 = vmatprep.subr.bf16.mxu0 0
    %418 = vmatpush1.bf16.msra.mxu0 0
    %419 = vmatprep.subr.bf16.mxu0 0
    %420 = vmatpush1.bf16.msra.mxu0 0
    %421 = vmatprep.subr.bf16.mxu0 0
    %422 = vmatpush1.bf16.msra.mxu0 0
    %423 = vmatprep.subr.bf16.mxu0 0
    %424 = vmatpush1.bf16.msra.mxu0 %v327
    %425 = vmatprep.subr.bf16.mxu0 0
    %426 = vmatpush2.bf16.msra.mxu0 0
    %427 = vmatprep.subr.bf16.mxu0 0
    %428 = vmatpush2.bf16.msra.mxu0 0
    %429 = vmatprep.subr.bf16.mxu0 0
    %430 = vmatpush2.bf16.msra.mxu0 0
    %431 = vmatprep.subr.bf16.mxu0 0
    %432 = vmatpush2.bf16.msra.mxu0 0
    %433 = vmatprep.subr.bf16.mxu0 0
    %434 = vmatpush2.bf16.msra.mxu0 0
    %435 = vmatprep.subr.bf16.mxu0 0
    %436 = vmatpush2.bf16.msra.mxu0 0
    %437 = vmatprep.subr.bf16.mxu0 0
    %438 = vmatpush2.bf16.msra.mxu0 0
    %439 = vmatprep.subr.bf16.mxu0 0
    %440 = vmatpush2.bf16.msra.mxu0 0
    %441 = vmatprep.mubr.bf16.mxu0 0
    %442 = vmatmul.mubr.bf16.gmra.mxu0 %v398
    %v443 = vpop.f32.mrf.mxu0
    %v444 = vadd.f32 %v339, %v443
    %v445 = vpop.f32.mrf.mxu0
    %v446 = vpop.f32.mrf.mxu0
    %v447 = vadd.f32 %v344, %v446
    %v448 = vpop.f32.mrf.mxu0
    %449 = vmatprep.mubr.bf16.mxu0 0
    %450 = vmatmul.mubr.bf16.gmra.mxu0 %v401
    %v451 = vpop.f32.mrf.mxu0
    %v452 = vadd.f32 %v349, %v451
    %v453 = vpop.f32.mrf.mxu0
    %v454 = vpop.f32.mrf.mxu0
    %v455 = vadd.f32 %v354, %v454
    %v456 = vpop.f32.mrf.mxu0
    %457 = vmatprep.mubr.bf16.mxu0 0
    %458 = vmatmul.mubr.bf16.gmra.mxu0 %v404
    %v459 = vpop.f32.mrf.mxu0
    %v460 = vadd.f32 %v359, %v459
    %v461 = vpop.f32.mrf.mxu0
    %v462 = vpop.f32.mrf.mxu0
    %v463 = vadd.f32 %v364, %v462
    %v464 = vpop.f32.mrf.mxu0
    %465 = vmatprep.mubr.bf16.mxu0 0
    %466 = vmatmul.mubr.bf16.gmra.mxu0 %v407
    %v467 = vpop.f32.mrf.mxu0
    %v468 = vadd.f32 %v369, %v467
    %v469 = vpop.f32.mrf.mxu0
    %v470 = vpop.f32.mrf.mxu0
    %v471 = vadd.f32 %v374, %v470
    %v472 = vpop.f32.mrf.mxu0
    %473 = vdwg.mxu0
    %v474 = vmax.f32 %v444, 0.0
    %v475 = vmax.f32 %v447, 0.0
    %v476 = vmax.f32 %v452, 0.0
    %v477 = vmax.f32 %v455, 0.0
    %v478 = vmax.f32 %v460, 0.0
    %v479 = vmax.f32 %v463, 0.0
    %v480 = vmax.f32 %v468, 0.0
    %v481 = vmax.f32 %v471, 0.0
    %v482 = vld [vmem:[%s11] sm:$0xf]
    %v483 = vld [vmem:[%s11 + $0x4] sm:$0xf]
    %v484 = vpack.c.bf16 %v475, %v474
    %v485 = vpack.c.bf16 %v477, %v476
    %v486 = vld [vmem:[%s12] sm:$0xff]
    %v487 = vld [vmem:[%s12 + $0x8] sm:$0xff]
    %489 = vset.pattern.permute.xlu0 0
    %490 = vperm.xlu0 %489, %v486
    %v491 = vpop.permute.xlu0 %490
    %494 = vset.pattern.permute.xlu0 0
    %495 = vperm.xlu0 %494, %v487
    %v496 = vpop.permute.xlu0 %495
    %v500 = vunpack.c.l.b16 %v482
    %v501 = vunpack.c.l.b16 %v483
    %v502 = vpack.c.b16 %v501, %v500
    %v504 = vsel %vm129, %v502, 0
    %506 = vmatprep.subr.bf16.mxu0 0
    %507 = vmatpush1.bf16.msra.mxu0 0
    %508 = vmatprep.subr.bf16.mxu0 0
    %509 = vmatpush1.bf16.msra.mxu0 0
    %510 = vmatprep.subr.bf16.mxu0 0
    %511 = vmatpush1.bf16.msra.mxu0 0
    %512 = vmatprep.subr.bf16.mxu0 0
    %513 = vmatpush1.bf16.msra.mxu0 0
    %514 = vmatprep.subr.bf16.mxu0 0
    %515 = vmatpush1.bf16.msra.mxu0 0
    %516 = vmatprep.subr.bf16.mxu0 0
    %517 = vmatpush1.bf16.msra.mxu0 0
    %518 = vmatprep.subr.bf16.mxu0 0
    %519 = vmatpush1.bf16.msra.mxu0 %v485
    %520 = vmatprep.subr.bf16.mxu0 0
    %521 = vmatpush1.bf16.msra.mxu0 %v484
    %522 = vmatprep.subr.bf16.mxu0 0
    %523 = vmatpush2.bf16.msra.mxu0 0
    %524 = vmatprep.subr.bf16.mxu0 0
    %525 = vmatpush2.bf16.msra.mxu0 0
    %526 = vmatprep.subr.bf16.mxu0 0
    %527 = vmatpush2.bf16.msra.mxu0 0
    %528 = vmatprep.subr.bf16.mxu0 0
    %529 = vmatpush2.bf16.msra.mxu0 0
    %530 = vmatprep.subr.bf16.mxu0 0
    %531 = vmatpush2.bf16.msra.mxu0 0
    %532 = vmatprep.subr.bf16.mxu0 0
    %533 = vmatpush2.bf16.msra.mxu0 0
    %534 = vmatprep.subr.bf16.mxu0 0
    %535 = vmatpush2.bf16.msra.mxu0 0
    %536 = vmatprep.subr.bf16.mxu0 0
    %537 = vmatpush2.bf16.msra.mxu0 0
    %538 = vmatprep.mubr.bf16.mxu0 0
    %539 = vmatmul.mubr.bf16.gmra.mxu0 %v504
    %v540 = vpop.f32.mrf.mxu0
    %v541 = vadd.f32 %v491, %v540
    %v542 = vpop.f32.mrf.mxu0
    %v543 = vpop.f32.mrf.mxu0
    %v544 = vadd.f32 %v496, %v543
    %v545 = vpop.f32.mrf.mxu0
    %546 = vdwg.mxu0
    %v547 = vxor.u32 %v541, 2147483648
    %v548 = vxor.u32 %v544, 2147483648
    %v549 = vmul.f32 %v547, 1.442695
    %v550 = vpow.pop %v549
    %v551 = vmul.f32 %v548, 1.442695
    %v552 = vpow.pop %v551
    %v553 = vadd.f32 %v550, 1.0
    %v554 = vadd.f32 %v552, 1.0
    %v555 = vrcp.pop %v553
    %v556 = vmul.f32 1.0, %v555
    %v557 = vrcp.pop %v554
    %v558 = vmul.f32 1.0, %v557
    %v559 = vld [vmem:[%s3] sm:$0xff]
    %v560 = vld [vmem:[%s3 + $0x8] sm:$0xff]
    %v561 = vsub.f32 %v556, %v559
    %v562 = vsub.f32 %v558, %v560
    %v563 = vmul.f32 %v561, %v561
    %v564 = vmul.f32 %v562, %v562
    %v565 = vmul.f32 %v563, %v74
    %v566 = vmul.f32 %v564, %v74
    %v567 = vadd.f32 %v565, %v566
    %568 = vadd.xlane.f32.xlu0 %v567
    %v569 = vpop.xlane.xlu0 %568
    %v570 = vrot.slane %v569, 4
    %v571 = vadd.f32 %v569, %v570
    %v572 = vrot.slane %v571, 2
    %v573 = vadd.f32 %v571, %v572
    %v574 = vrot.slane %v573, 1
    %v575 = vadd.f32 %v573, %v574
    %s576 = vtos %v575
    %v577 = vld [vmem:[%s13] sm:$0xf]
    %v578 = vld [vmem:[%s13 + $0x4] sm:$0xf]
    %v579 = vld [vmem:[%s13 + $0x8] sm:$0xf]
    %v580 = vld [vmem:[%s13 + $0xc] sm:$0xf]
    %v581 = vpack.c.bf16 %v479, %v478
    %v582 = vpack.c.bf16 %v481, %v480
    %v583 = vld [vmem:[%s14] sm:$0xff]
    %v584 = vld [vmem:[%s14 + $0x8] sm:$0xff]
    %v585 = vld [vmem:[%s14 + $0x10] sm:$0xff]
    %v586 = vld [vmem:[%s14 + $0x18] sm:$0xff]
    %588 = vset.pattern.permute.xlu0 0
    %589 = vperm.xlu0 %588, %v583
    %v590 = vpop.permute.xlu0 %589
    %593 = vset.pattern.permute.xlu0 0
    %594 = vperm.xlu0 %593, %v584
    %v595 = vpop.permute.xlu0 %594
    %598 = vset.pattern.permute.xlu0 0
    %599 = vperm.xlu0 %598, %v585
    %v600 = vpop.permute.xlu0 %599
    %603 = vset.pattern.permute.xlu0 0
    %604 = vperm.xlu0 %603, %v586
    %v605 = vpop.permute.xlu0 %604
    %v611 = vunpack.c.l.b16 %v577
    %v612 = vunpack.c.l.b16 %v578
    %v613 = vunpack.c.l.b16 %v579
    %v614 = vunpack.c.l.b16 %v580
    %v615 = vpack.c.b16 %v612, %v611
    %v616 = vpack.c.b16 %v614, %v613
    %v618 = vsel %vm129, %v615, 0
    %v621 = vsel %vm129, %v616, 0
    %623 = vmatprep.subr.bf16.mxu0 0
    %624 = vmatpush1.bf16.msra.mxu0 0
    %625 = vmatprep.subr.bf16.mxu0 0
    %626 = vmatpush1.bf16.msra.mxu0 0
    %627 = vmatprep.subr.bf16.mxu0 0
    %628 = vmatpush1.bf16.msra.mxu0 0
    %629 = vmatprep.subr.bf16.mxu0 0
    %630 = vmatpush1.bf16.msra.mxu0 0
    %631 = vmatprep.subr.bf16.mxu0 0
    %632 = vmatpush1.bf16.msra.mxu0 0
    %633 = vmatprep.subr.bf16.mxu0 0
    %634 = vmatpush1.bf16.msra.mxu0 0
    %635 = vmatprep.subr.bf16.mxu0 0
    %636 = vmatpush1.bf16.msra.mxu0 %v582
    %637 = vmatprep.subr.bf16.mxu0 0
    %638 = vmatpush1.bf16.msra.mxu0 %v581
    %639 = vmatprep.subr.bf16.mxu0 0
    %640 = vmatpush2.bf16.msra.mxu0 0
    %641 = vmatprep.subr.bf16.mxu0 0
    %642 = vmatpush2.bf16.msra.mxu0 0
    %643 = vmatprep.subr.bf16.mxu0 0
    %644 = vmatpush2.bf16.msra.mxu0 0
    %645 = vmatprep.subr.bf16.mxu0 0
    %646 = vmatpush2.bf16.msra.mxu0 0
    %647 = vmatprep.subr.bf16.mxu0 0
    %648 = vmatpush2.bf16.msra.mxu0 0
    %649 = vmatprep.subr.bf16.mxu0 0
    %650 = vmatpush2.bf16.msra.mxu0 0
    %651 = vmatprep.subr.bf16.mxu0 0
    %652 = vmatpush2.bf16.msra.mxu0 0
    %653 = vmatprep.subr.bf16.mxu0 0
    %654 = vmatpush2.bf16.msra.mxu0 0
    %655 = vmatprep.mubr.bf16.mxu0 0
    %656 = vmatmul.mubr.bf16.gmra.mxu0 %v618
    %v657 = vpop.f32.mrf.mxu0
    %v658 = vadd.f32 %v590, %v657
    %v659 = vpop.f32.mrf.mxu0
    %v660 = vpop.f32.mrf.mxu0
    %v661 = vadd.f32 %v595, %v660
    %v662 = vpop.f32.mrf.mxu0
    %663 = vmatprep.mubr.bf16.mxu0 0
    %664 = vmatmul.mubr.bf16.gmra.mxu0 %v621
    %v665 = vpop.f32.mrf.mxu0
    %v666 = vadd.f32 %v600, %v665
    %v667 = vpop.f32.mrf.mxu0
    %v668 = vpop.f32.mrf.mxu0
    %v669 = vadd.f32 %v605, %v668
    %v670 = vpop.f32.mrf.mxu0
    %671 = vdwg.mxu0
    %v672 = vmul.f32 %v666, 0.5
    %v673 = vmul.f32 %v669, 0.5
    %v674 = vmul.f32 %v672, 1.442695
    %v675 = vpow.pop %v674
    %v676 = vmul.f32 %v673, 1.442695
    %v677 = vpow.pop %v676
    %v678 = vadd.f32 %v666, 1.0
    %v679 = vadd.f32 %v669, 1.0
    %v680 = vmul.f32 %v658, %v658
    %v681 = vmul.f32 %v661, %v661
    %v682 = vsub.f32 %v678, %v680
    %v683 = vsub.f32 %v679, %v681
    %v684 = vmul.f32 %v675, %v675
    %v685 = vmul.f32 %v677, %v677
    %v686 = vsub.f32 %v682, %v684
    %v687 = vsub.f32 %v683, %v685
    %v688 = vmul.f32 %v686, %v74
    %v689 = vmul.f32 %v687, %v74
    %v690 = vadd.f32 %v688, %v689
    %691 = vadd.xlane.f32.xlu0 %v690
    %v692 = vpop.xlane.xlu0 %691
    %v693 = vrot.slane %v692, 4
    %v694 = vadd.f32 %v692, %v693
    %v695 = vrot.slane %v694, 2
    %v696 = vadd.f32 %v694, %v695
    %v697 = vrot.slane %v696, 1
    %v698 = vadd.f32 %v696, %v697
    %s699 = vtos %v698
    %s700 = smul.f32 %s699, -0.03125
    %v701 = vld [vmem:[%s2] sm:$0xff]
    %v702 = vld [vmem:[%s2 + $0x8] sm:$0xff]
    %v703 = vmul.f32 %v701, %v675
    %v704 = vmul.f32 %v702, %v677
    %v705 = vadd.f32 %v658, %v703
    %v706 = vadd.f32 %v661, %v704
    %707 = vst [vmem:[#allocation2] sm:$0xff] %v705
    %708 = vst [vmem:[#allocation2 + $0x8] sm:$0xff] %v706
    %v709 = vld [vmem:[%s15] sm:$0xf]
    %v710 = vld [vmem:[%s15 + $0x4] sm:$0xf]
    %v711 = vld [vmem:[%s15 + $0x8] sm:$0xf]
    %v712 = vld [vmem:[%s15 + $0xc] sm:$0xf]
    %v713 = vpack.c.bf16 %v706, %v705
    %v714 = vld [vmem:[%s16] sm:$0xff]
    %v715 = vld [vmem:[%s16 + $0x8] sm:$0xff]
    %v716 = vld [vmem:[%s16 + $0x10] sm:$0xff]
    %v717 = vld [vmem:[%s16 + $0x18] sm:$0xff]
    %719 = vset.pattern.permute.xlu0 0
    %720 = vperm.xlu0 %719, %v714
    %v721 = vpop.permute.xlu0 %720
    %724 = vset.pattern.permute.xlu0 0
    %725 = vperm.xlu0 %724, %v715
    %v726 = vpop.permute.xlu0 %725
    %729 = vset.pattern.permute.xlu0 0
    %730 = vperm.xlu0 %729, %v716
    %v731 = vpop.permute.xlu0 %730
    %734 = vset.pattern.permute.xlu0 0
    %735 = vperm.xlu0 %734, %v717
    %v736 = vpop.permute.xlu0 %735
    %v742 = vunpack.c.l.b16 %v709
    %v743 = vunpack.c.l.b16 %v710
    %v744 = vunpack.c.l.b16 %v711
    %v745 = vunpack.c.l.b16 %v712
    %v746 = vpack.c.b16 %v743, %v742
    %v747 = vpack.c.b16 %v745, %v744
    %v749 = vsel %vm396, %v746, 0
    %v752 = vsel %vm396, %v747, 0
    %754 = vmatprep.subr.bf16.mxu0 0
    %755 = vmatpush1.bf16.msra.mxu0 0
    %756 = vmatprep.subr.bf16.mxu0 0
    %757 = vmatpush1.bf16.msra.mxu0 0
    %758 = vmatprep.subr.bf16.mxu0 0
    %759 = vmatpush1.bf16.msra.mxu0 0
    %760 = vmatprep.subr.bf16.mxu0 0
    %761 = vmatpush1.bf16.msra.mxu0 0
    %762 = vmatprep.subr.bf16.mxu0 0
    %763 = vmatpush1.bf16.msra.mxu0 0
    %764 = vmatprep.subr.bf16.mxu0 0
    %765 = vmatpush1.bf16.msra.mxu0 0
    %766 = vmatprep.subr.bf16.mxu0 0
    %767 = vmatpush1.bf16.msra.mxu0 0
    %768 = vmatprep.subr.bf16.mxu0 0
    %769 = vmatpush1.bf16.msra.mxu0 %v713
    %770 = vmatprep.subr.bf16.mxu0 0
    %771 = vmatpush2.bf16.msra.mxu0 0
    %772 = vmatprep.subr.bf16.mxu0 0
    %773 = vmatpush2.bf16.msra.mxu0 0
    %774 = vmatprep.subr.bf16.mxu0 0
    %775 = vmatpush2.bf16.msra.mxu0 0
    %776 = vmatprep.subr.bf16.mxu0 0
    %777 = vmatpush2.bf16.msra.mxu0 0
    %778 = vmatprep.subr.bf16.mxu0 0
    %779 = vmatpush2.bf16.msra.mxu0 0
    %780 = vmatprep.subr.bf16.mxu0 0
    %781 = vmatpush2.bf16.msra.mxu0 0
    %782 = vmatprep.subr.bf16.mxu0 0
    %783 = vmatpush2.bf16.msra.mxu0 0
    %784 = vmatprep.subr.bf16.mxu0 0
    %785 = vmatpush2.bf16.msra.mxu0 0
    %786 = vmatprep.mubr.bf16.mxu0 0
    %787 = vmatmul.mubr.bf16.gmra.mxu0 %v749
    %v788 = vpop.f32.mrf.mxu0
    %v789 = vadd.f32 %v721, %v788
    %v790 = vpop.f32.mrf.mxu0
    %v791 = vpop.f32.mrf.mxu0
    %v792 = vadd.f32 %v726, %v791
    %v793 = vpop.f32.mrf.mxu0
    %794 = vmatprep.mubr.bf16.mxu0 0
    %795 = vmatmul.mubr.bf16.gmra.mxu0 %v752
    %v796 = vpop.f32.mrf.mxu0
    %v797 = vadd.f32 %v731, %v796
    %v798 = vpop.f32.mrf.mxu0
    %v799 = vpop.f32.mrf.mxu0
    %v800 = vadd.f32 %v736, %v799
    %v801 = vpop.f32.mrf.mxu0
    %802 = vdwg.mxu0
    %v803 = vmax.f32 %v789, 0.0
    %v804 = vmax.f32 %v792, 0.0
    %v805 = vmax.f32 %v797, 0.0
    %v806 = vmax.f32 %v800, 0.0
    %v807 = vld [vmem:[%s17] sm:$0xf]
    %v808 = vld [vmem:[%s17 + $0x4] sm:$0xf]
    %v809 = vpack.c.bf16 %v804, %v803
    %v810 = vpack.c.bf16 %v806, %v805
    %v811 = vld [vmem:[%s18] sm:$0xff]
    %v812 = vld [vmem:[%s18 + $0x8] sm:$0xff]
    %814 = vset.pattern.permute.xlu0 0
    %815 = vperm.xlu0 %814, %v811
    %v816 = vpop.permute.xlu0 %815
    %819 = vset.pattern.permute.xlu0 0
    %820 = vperm.xlu0 %819, %v812
    %v821 = vpop.permute.xlu0 %820
    %v825 = vunpack.c.l.b16 %v807
    %v826 = vunpack.c.l.b16 %v808
    %v827 = vpack.c.b16 %v826, %v825
    %v829 = vsel %vm129, %v827, 0
    %831 = vmatprep.subr.bf16.mxu0 0
    %832 = vmatpush1.bf16.msra.mxu0 0
    %833 = vmatprep.subr.bf16.mxu0 0
    %834 = vmatpush1.bf16.msra.mxu0 0
    %835 = vmatprep.subr.bf16.mxu0 0
    %836 = vmatpush1.bf16.msra.mxu0 0
    %837 = vmatprep.subr.bf16.mxu0 0
    %838 = vmatpush1.bf16.msra.mxu0 0
    %839 = vmatprep.subr.bf16.mxu0 0
    %840 = vmatpush1.bf16.msra.mxu0 0
    %841 = vmatprep.subr.bf16.mxu0 0
    %842 = vmatpush1.bf16.msra.mxu0 0
    %843 = vmatprep.subr.bf16.mxu0 0
    %844 = vmatpush1.bf16.msra.mxu0 %v810
    %845 = vmatprep.subr.bf16.mxu0 0
    %846 = vmatpush1.bf16.msra.mxu0 %v809
    %847 = vmatprep.subr.bf16.mxu0 0
    %848 = vmatpush2.bf16.msra.mxu0 0
    %849 = vmatprep.subr.bf16.mxu0 0
    %850 = vmatpush2.bf16.msra.mxu0 0
    %851 = vmatprep.subr.bf16.mxu0 0
    %852 = vmatpush2.bf16.msra.mxu0 0
    %853 = vmatprep.subr.bf16.mxu0 0
    %854 = vmatpush2.bf16.msra.mxu0 0
    %855 = vmatprep.subr.bf16.mxu0 0
    %856 = vmatpush2.bf16.msra.mxu0 0
    %857 = vmatprep.subr.bf16.mxu0 0
    %858 = vmatpush2.bf16.msra.mxu0 0
    %859 = vmatprep.subr.bf16.mxu0 0
    %860 = vmatpush2.bf16.msra.mxu0 0
    %861 = vmatprep.subr.bf16.mxu0 0
    %862 = vmatpush2.bf16.msra.mxu0 0
    %863 = vmatprep.mubr.bf16.mxu0 0
    %864 = vmatmul.mubr.bf16.gmra.mxu0 %v829
    %v865 = vpop.f32.mrf.mxu0
    %v866 = vadd.f32 %v816, %v865
    %v867 = vpop.f32.mrf.mxu0
    %v868 = vpop.f32.mrf.mxu0
    %v869 = vadd.f32 %v821, %v868
    %v870 = vpop.f32.mrf.mxu0
    %871 = vdwg.mxu0
    %v872 = vxor.u32 %v866, 2147483648
    %v873 = vxor.u32 %v869, 2147483648
    %v874 = vmul.f32 %v872, 1.442695
    %v875 = vpow.pop %v874
    %v876 = vmul.f32 %v873, 1.442695
    %v877 = vpow.pop %v876
    %v878 = vadd.f32 %v875, 1.0
    %v879 = vadd.f32 %v877, 1.0
    %v880 = vrcp.pop %v878
    %v881 = vmul.f32 1.0, %v880
    %v882 = vrcp.pop %v879
    %v883 = vmul.f32 1.0, %v882
    %v884 = vld [vmem:[%s4] sm:$0xff]
    %v885 = vld [vmem:[%s4 + $0x8] sm:$0xff]
    %v886 = vsub.f32 %v881, %v884
    %v887 = vsub.f32 %v883, %v885
    %v888 = vmul.f32 %v886, %v886
    %v889 = vmul.f32 %v887, %v887
    %v890 = vmul.f32 %v888, %v74
    %v891 = vmul.f32 %v889, %v74
    %v892 = vadd.f32 %v890, %v891
    %893 = vadd.xlane.f32.xlu0 %v892
    %v894 = vpop.xlane.xlu0 %893
    %v895 = vrot.slane %v894, 4
    %v896 = vadd.f32 %v894, %v895
    %v897 = vrot.slane %v896, 2
    %v898 = vadd.f32 %v896, %v897
    %v899 = vrot.slane %v898, 1
    %v900 = vadd.f32 %v898, %v899
    %s901 = vtos %v900
    %v902 = vlaneseq
    %v903 = vshrl.u32 %v902, 7
    %vm904 = vcmp.eq.s32.totalorder %v903, 0
    %v905 = vstv %s312
    %v906 = vsel %vm904, %v905, 0.0
    %vm907 = vcmp.eq.s32.totalorder %v903, 1
    %v908 = vstv %s576
    %v909 = vsel %vm907, %v908, 0.0
    %v910 = vadd.f32 %v906, %v909
    %vm911 = vcmp.eq.s32.totalorder %v903, 2
    %v912 = vstv %s700
    %v913 = vsel %vm911, %v912, 0.0
    %v914 = vadd.f32 %v910, %v913
    %vm915 = vcmp.eq.s32.totalorder %v903, 3
    %v916 = vstv %s901
    %v917 = vsel %vm915, %v916, 0.0
    %v918 = vadd.f32 %v914, %v917
    %919 = vst [vmem:[#allocation4] sm:$0xff] %v918
    // Predicated region
    $region78: #{tpu_custom_call.1} parent=1 // pred_check
      _
    $region79: #{tpu_custom_call.1} parent=1 // pred_check_branch
      %921 = sbr.rel (0) target = $region81
    $region80: #{tpu_custom_call.1} parent=1 // pred_region
      %s923 = ssub.s32 256, 256
      %924 = vsyncadd [#allocation3], %s923
      %s925 = sshll.u32 [#allocation2], 4
      %s926 = int_to_ptr.vmem [resolvable:$true] %s925
      %931 = dma.vmem_to_hbm [thread:$0]  %s926, 256, %s19, [#allocation3], 128, 128, 8
    $region81: #{tpu_custom_call.1} parent=1 // pred_fallthru
      _
    // Predicated region
    $region82: #{tpu_custom_call.1} parent=1 // pred_check
      _
    $region83: #{tpu_custom_call.1} parent=1 // pred_check_branch
      %933 = sbr.rel (0) target = $region85
    $region84: #{tpu_custom_call.1} parent=1 // pred_region
      %s935 = ssub.s32 128, 128
      %936 = vsyncadd [#allocation5], %s935
      %s938 = sshll.u32 [#allocation4], 4
      %s939 = int_to_ptr.vmem [resolvable:$true] %s938
      %941 = dma.vmem_to_hbm [thread:$0]  %s939, 128, %s20, [#allocation5]
    $region85: #{tpu_custom_call.1} parent=1 // pred_fallthru
      _
    // Predicated region
    $region86: #{tpu_custom_call.1} parent=1 // pred_check
      _
    $region87: #{tpu_custom_call.1} parent=1 // pred_check_branch
      %943 = sbr.rel (0) target = $region89
    $region88: #{tpu_custom_call.1} parent=1 // pred_region
      %944 = dma.done [#allocation3], 256
    $region89: #{tpu_custom_call.1} parent=1 // pred_fallthru
      _
    // Predicated region
    $region90: #{tpu_custom_call.1} parent=1 // pred_check
      _
    $region91: #{tpu_custom_call.1} parent=1 // pred_check_branch
      %946 = sbr.rel (0) target = $region93
    $region92: #{tpu_custom_call.1} parent=1 // pred_region
      %947 = dma.done [#allocation5], 128
    $region93: #{tpu_custom_call.1} parent=1 // pred_fallthru
      _
    %948 = vsyncpa [#allocation3], 1
    %949 = vsyncpa [#allocation5], 1

</llo_original>
